<compile_context>
chip_gen: v6e
topology: v6e:2x2x1
jax: 0.10.0
libtpu: 0.0.40
codegen_flags: <defaults>
</compile_context>

<pallas_src>
import functools

import jax
import jax.numpy as jnp
from jax import lax
from jax.experimental import pallas as pl
from jax.experimental.pallas import tpu as pltpu


def _round_up(x, m):
    return (x + m - 1) // m * m


def _vmem_limit_bytes(per_step_bytes):
    # 2x for double buffering + headroom for compiler scratch; clamped to the
    # smallest physical VMEM across current gens (64 MiB/TC on v7x).
    need = 2 * per_step_bytes + (16 << 20)
    return int(min(max(need, 32 << 20), 64 << 20))


def _conv_stats_kernel(xph_ref, w_ref, conv_ref, sum_ref, m2_ref,
                       *, ho, wo, cin, c_pad):
    """3x3/s2/p1 conv for one image + per-channel (sum, centered sum-of-squares).

    xph_ref : (4, Ho+1, Wo+1, Cin) bf16 polyphase slab, xph[2a+b,i,j,:] = x_pad[2i+a, 2j+b, :]
    w_ref   : (9, Cin, Cpad)       f32 tap-major weights (Cout zero-padded to Cpad)
    conv_ref: (1, Cpad, Ho*Wo)     bf16 channel-major conv intermediate
    sum_ref : (1, 1, Cpad)         f32 per-channel sum
    m2_ref  : (1, 1, Cpad)         f32 per-channel centered sum of squares
    """
    msz = ho * wo
    acc = jnp.zeros((msz, c_pad), jnp.float32)

    # 9 accumulated (Ho*Wo, Cin) x (Cin, Cpad) matmuls on the MXU; taps are
    # contiguous slices of the polyphase slab (no strided loads, no im2col).
    for kh in range(3):
        rp, rs = kh % 2, kh // 2          # row phase / row shift
        for kw in range(3):
            cp, cs = kw % 2, kw // 2      # col phase / col shift
            tap = xph_ref[2 * rp + cp, rs:rs + ho, cs:cs + wo, :]
            tap = tap.astype(jnp.float32).reshape(msz, cin)
            acc = acc + jnp.dot(tap, w_ref[3 * kh + kw],
                                preferred_element_type=jnp.float32)

    # Per-channel stats via ones-row matmuls (MXU; keeps VPU/store slots free).
    # Mean-shifted so the wrapper can merge variances without cancellation.
    ones_row = jnp.ones((1, msz), jnp.float32)
    s = jnp.dot(ones_row, acc, preferred_element_type=jnp.float32)       # (1, Cpad)
    mu = s * (1.0 / msz)
    d = acc - mu
    m2 = jnp.dot(ones_row, d * d, preferred_element_type=jnp.float32)    # (1, Cpad)
    sum_ref[0] = s
    m2_ref[0] = m2

    # Channel-major bf16 intermediate: halves the HBM round trip vs f32 and
    # lets phase 2 write NCHW directly without its own transpose.
    conv_ref[0] = jnp.transpose(acc).astype(jnp.bfloat16)


def _bn_lrelu_kernel(conv_ref, scale_ref, shift_ref, o_ref, *, cout, neg_slope):
    """Folded BatchNorm scale/shift + LeakyReLU; writes the NCHW block directly."""
    y = conv_ref[0].astype(jnp.float32)            # (Cpad, Ho*Wo), f32 vregs
    y = y * scale_ref[...] + shift_ref[...]        # (Cpad, 1) broadcasts over lanes
    y = jnp.where(y > 0, y, neg_slope * y)
    o_ref[0] = y[:cout, :]                         # drop zero-padded channels


def downsample_block(x_nchw, weight, bias, gamma, beta,
                     *, eps=1e-5, neg_slope=0.01):
    """Conv2d(3x3, stride=2, pad=1) + BatchNorm2d (training stats) + LeakyReLU(0.01).

    x_nchw: (N, Cin, H, W) f32; weight: (Cout, Cin, 3, 3); bias/gamma/beta: (Cout,)
    Returns (N, Cout, Ho, Wo) f32 with Ho = (H+1)//2, Wo = (W+1)//2.
    """
    n, cin, h, w = x_nchw.shape
    cout = weight.shape[0]
    ho = (h + 2 - 3) // 2 + 1
    wo = (w + 2 - 3) // 2 + 1
    msz = ho * wo
    m_total = n * msz
    c_pad = _round_up(cout, 128)

    # Conv bias cancels exactly under training-mode BN mean subtraction.
    del bias

    # --- polyphase NHWC bf16 input (one fused XLA copy, ~input-sized) ---
    hp, wp = 2 * ho + 2, 2 * wo + 2
    x = jnp.transpose(x_nchw, (0, 2, 3, 1)).astype(jnp.bfloat16)          # NHWC
    x_pad = jnp.pad(x, ((0, 0), (1, hp - h - 1), (1, wp - w - 1), (0, 0)))
    xph = x_pad.reshape(n, ho + 1, 2, wo + 1, 2, cin)
    xph = jnp.transpose(xph, (0, 2, 4, 1, 3, 5))                          # (N,2,2,Ho+1,Wo+1,Cin)
    xph = xph.reshape(n * 4, ho + 1, wo + 1, cin)

    # --- tap-major weights, Cout zero-padded to the lane width ---
    w_mat = jnp.transpose(weight, (2, 3, 1, 0)).reshape(9, cin, cout)
    w_mat = jnp.pad(w_mat, ((0, 0), (0, 0), (0, c_pad - cout))).astype(jnp.float32)

    # Derived VMEM limits (input slab + weights + outputs + f32 accumulator).
    blk1 = (4 * (ho + 1) * (wo + 1) * cin * 2 + 9 * cin * c_pad * 4
            + msz * c_pad * 2 + 4 * c_pad * 4 + 3 * msz * c_pad * 4)
    blk2 = msz * c_pad * 2 + 2 * c_pad * 4 + cout * msz * 4 + msz * c_pad * 4

    # --- phase 1: conv + per-image channel stats, one image per grid step ---
    conv_t, psum, pm2 = pl.pallas_call(
        functools.partial(_conv_stats_kernel, ho=ho, wo=wo, cin=cin, c_pad=c_pad),
        out_shape=(
            jax.ShapeDtypeStruct((n, c_pad, msz), jnp.bfloat16),
            jax.ShapeDtypeStruct((n, 1, c_pad), jnp.float32),
            jax.ShapeDtypeStruct((n, 1, c_pad), jnp.float32),
        ),
        grid=(n,),
        in_specs=[
            pl.BlockSpec((4, ho + 1, wo + 1, cin), lambda i: (i, 0, 0, 0)),
            pl.BlockSpec((9, cin, c_pad), lambda i: (0, 0, 0)),
        ],
        out_specs=(
            pl.BlockSpec((1, c_pad, msz), lambda i: (i, 0, 0)),
            pl.BlockSpec((1, 1, c_pad), lambda i: (i, 0, 0)),
            pl.BlockSpec((1, 1, c_pad), lambda i: (i, 0, 0)),
        ),
        compiler_params=pltpu.CompilerParams(
            dimension_semantics=("parallel",),
            vmem_limit_bytes=_vmem_limit_bytes(blk1)),
    )(xph, w_mat)

    # --- tiny finalize: fold training-mode BN into one scale/shift pair ---
    s_g = psum[:, 0, :]                                    # (N, Cpad) per-image sums
    m2_g = pm2[:, 0, :]                                    # (N, Cpad) centered sumsq
    mean = jnp.sum(s_g, axis=0) / m_total                  # (Cpad,)
    mu_g = s_g / msz
    var = (jnp.sum(m2_g, axis=0)
           + msz * jnp.sum((mu_g - mean) ** 2, axis=0)) / m_total
    var = jnp.maximum(var, 0.0)
    inv_std = lax.rsqrt(var + eps)
    gamma_p = jnp.pad(gamma.astype(jnp.float32), (0, c_pad - cout),
                      constant_values=1.0)
    beta_p = jnp.pad(beta.astype(jnp.float32), (0, c_pad - cout))
    scale = (gamma_p * inv_std).reshape(c_pad, 1)
    shift = (beta_p - mean * gamma_p * inv_std).reshape(c_pad, 1)

    # --- phase 2: scale/shift + LeakyReLU, writes the NCHW output directly ---
    y = pl.pallas_call(
        functools.partial(_bn_lrelu_kernel, cout=cout, neg_slope=neg_slope),
        out_shape=jax.ShapeDtypeStruct((n, cout, msz), jnp.float32),
        grid=(n,),
        in_specs=[
            pl.BlockSpec((1, c_pad, msz), lambda i: (i, 0, 0)),
            pl.BlockSpec((c_pad, 1), lambda i: (0, 0)),
            pl.BlockSpec((c_pad, 1), lambda i: (0, 0)),
        ],
        out_specs=pl.BlockSpec((1, cout, msz), lambda i: (i, 0, 0)),
        compiler_params=pltpu.CompilerParams(
            dimension_semantics=("parallel",),
            vmem_limit_bytes=_vmem_limit_bytes(blk2)),
    )(conv_t, scale, shift)

    # (N, Cout, Ho*Wo) -> (N, Cout, Ho, Wo) is a free metadata reshape.
    return y.reshape(n, cout, ho, wo)


def _reference(x, weight, bias, gamma, beta, eps=1e-5, neg_slope=0.01,
               x_dtype=jnp.float32, store_dtype=None):
    conv = lax.conv_general_dilated(
        x.astype(x_dtype).astype(jnp.float32), weight.astype(jnp.float32),
        window_strides=(2, 2), padding=((1, 1), (1, 1)),
        dimension_numbers=("NCHW", "OIHW", "NCHW"),
        preferred_element_type=jnp.float32)
    conv = conv + bias.reshape(1, -1, 1, 1)
    mean = jnp.mean(conv, axis=(0, 2, 3), keepdims=True)
    var = jnp.mean((conv - mean) ** 2, axis=(0, 2, 3), keepdims=True)
    if store_dtype is not None:
        conv = conv.astype(store_dtype).astype(jnp.float32)
    y = (conv - mean) * lax.rsqrt(var + eps)
    y = y * gamma.reshape(1, -1, 1, 1) + beta.reshape(1, -1, 1, 1)
    return jnp.where(y > 0, y, neg_slope * y)


if __name__ == "__main__":
    key = jax.random.PRNGKey(0)
    k_x, k_w, k_b = jax.random.split(key, 3)

    N, Cin, Cout, H, W = 2, 4, 8, 16, 16
    x = jax.random.normal(k_x, (N, Cin, H, W), dtype=jnp.float32)

    # Deterministic parameter init (shapes per nn.Conv2d / nn.BatchNorm2d).
    fan_in = Cin * 3 * 3
    bound = 1.0 / (fan_in ** 0.5)
    weight = jax.random.uniform(k_w, (Cout, Cin, 3, 3),
                                minval=-bound, maxval=bound, dtype=jnp.float32)
    bias = jax.random.uniform(k_b, (Cout,),
                              minval=-bound, maxval=bound, dtype=jnp.float32)
    gamma = jnp.ones((Cout,), jnp.float32)
    beta = jnp.zeros((Cout,), jnp.float32)

    fn = jax.jit(downsample_block)
    out = jax.block_until_ready(fn(x, weight, bias, gamma, beta))
    assert out.shape == (N, Cout, H // 2, W // 2), out.shape

    # Tight check against a reference matching the kernel's quantization
    # (bf16-rounded inputs, f32 products/stats, bf16-stored conv, bias-free).
    ref_matched = _reference(x, weight, jnp.zeros_like(bias), gamma, beta,
                             x_dtype=jnp.bfloat16, store_dtype=jnp.bfloat16)
    err_matched = float(jnp.max(jnp.abs(out - ref_matched)))
    assert err_matched < 1e-2, err_matched

    # Loose check against the exact f32 module semantics (bf16 rounding of the
    # inputs / conv intermediate introduces ~1e-2 differences after BN).
    ref_exact = _reference(x, weight, bias, gamma, beta)
    err_exact = float(jnp.max(jnp.abs(out - ref_exact)))
    assert err_exact < 5e-2, err_exact

    print("KERNEL_OK")
</pallas_src>

<mosaic_0001>
module attributes {stable_mosaic.version = 11 : i64} {
  func.func @_conv_stats_kernel(%arg0: i32, %arg1: memref<4x9x9x4xbf16, #tpu.memory_space<vmem>>, %arg2: memref<9x4x128xf32, #tpu.memory_space<vmem>>, %arg3: memref<1x128x64xbf16, #tpu.memory_space<vmem>>, %arg4: memref<1x1x128xf32, #tpu.memory_space<vmem>>, %arg5: memref<1x1x128xf32, #tpu.memory_space<vmem>>) attributes {dimension_semantics = [#tpu.dimension_semantics<parallel>], iteration_bounds = array<i64: 2>, scalar_prefetch = 0 : i64, scratch_operands = 0 : i64, tpu.core_type = #tpu.core_type<tc>, window_params = [{transform_indices = @transform_0, window_bounds = array<i64: 4, 9, 9, 4>}, {pipeline_mode = #tpu.pipeline_mode<synchronous>, transform_indices = @transform_1, window_bounds = array<i64: 9, 4, 128>}, {transform_indices = @transform_2, window_bounds = array<i64: 1, 128, 64>}, {transform_indices = @transform_3, window_bounds = array<i64: 1, 1, 128>}, {transform_indices = @transform_4, window_bounds = array<i64: 1, 1, 128>}]} {
    %cst = arith.constant 0.000000e+00 : f32
    %0 = vector.broadcast %cst : f32 to vector<64x128xf32>
    %c0 = arith.constant 0 : index
    %c0_0 = arith.constant 0 : index
    %c0_1 = arith.constant 0 : index
    %c0_2 = arith.constant 0 : index
    %1 = vector.load %arg1[%c0, %c0_0, %c0_1, %c0_2] : memref<4x9x9x4xbf16, #tpu.memory_space<vmem>>, vector<1x8x8x4xbf16>
    %2 = vector.shape_cast %1 : vector<1x8x8x4xbf16> to vector<8x8x4xbf16>
    %3 = arith.extf %2 : vector<8x8x4xbf16> to vector<8x8x4xf32>
    %4 = vector.shape_cast %3 : vector<8x8x4xf32> to vector<64x4xf32>
    %c0_3 = arith.constant 0 : index
    %c0_4 = arith.constant 0 : index
    %c0_5 = arith.constant 0 : index
    %5 = vector.load %arg2[%c0_3, %c0_4, %c0_5] : memref<9x4x128xf32, #tpu.memory_space<vmem>>, vector<1x4x128xf32>
    %6 = vector.shape_cast %5 : vector<1x4x128xf32> to vector<4x128xf32>
    %cst_6 = arith.constant dense<0.000000e+00> : vector<64x128xf32>
    %7 = tpu.matmul %4, %6, %cst_6 {dimension_numbers = #tpu.dot_dimension_numbers<[1], [0], [0], [1], [0, 0, 1, 1], [], []>} : vector<64x4xf32>, vector<4x128xf32>, vector<64x128xf32> -> vector<64x128xf32>
    %8 = arith.addf %0, %7 : vector<64x128xf32>
    %c1 = arith.constant 1 : index
    %c0_7 = arith.constant 0 : index
    %c0_8 = arith.constant 0 : index
    %c0_9 = arith.constant 0 : index
    %9 = vector.load %arg1[%c1, %c0_7, %c0_8, %c0_9] : memref<4x9x9x4xbf16, #tpu.memory_space<vmem>>, vector<1x8x8x4xbf16>
    %10 = vector.shape_cast %9 : vector<1x8x8x4xbf16> to vector<8x8x4xbf16>
    %11 = arith.extf %10 : vector<8x8x4xbf16> to vector<8x8x4xf32>
    %12 = vector.shape_cast %11 : vector<8x8x4xf32> to vector<64x4xf32>
    %c1_10 = arith.constant 1 : index
    %c0_11 = arith.constant 0 : index
    %c0_12 = arith.constant 0 : index
    %13 = vector.load %arg2[%c1_10, %c0_11, %c0_12] : memref<9x4x128xf32, #tpu.memory_space<vmem>>, vector<1x4x128xf32>
    %14 = vector.shape_cast %13 : vector<1x4x128xf32> to vector<4x128xf32>
    %cst_13 = arith.constant dense<0.000000e+00> : vector<64x128xf32>
    %15 = tpu.matmul %12, %14, %cst_13 {dimension_numbers = #tpu.dot_dimension_numbers<[1], [0], [0], [1], [0, 0, 1, 1], [], []>} : vector<64x4xf32>, vector<4x128xf32>, vector<64x128xf32> -> vector<64x128xf32>
    %16 = arith.addf %8, %15 : vector<64x128xf32>
    %c0_14 = arith.constant 0 : index
    %c0_15 = arith.constant 0 : index
    %c1_16 = arith.constant 1 : index
    %c0_17 = arith.constant 0 : index
    %17 = vector.load %arg1[%c0_14, %c0_15, %c1_16, %c0_17] : memref<4x9x9x4xbf16, #tpu.memory_space<vmem>>, vector<1x8x8x4xbf16>
    %18 = vector.shape_cast %17 : vector<1x8x8x4xbf16> to vector<8x8x4xbf16>
    %19 = arith.extf %18 : vector<8x8x4xbf16> to vector<8x8x4xf32>
    %20 = vector.shape_cast %19 : vector<8x8x4xf32> to vector<64x4xf32>
    %c2 = arith.constant 2 : index
    %c0_18 = arith.constant 0 : index
    %c0_19 = arith.constant 0 : index
    %21 = vector.load %arg2[%c2, %c0_18, %c0_19] : memref<9x4x128xf32, #tpu.memory_space<vmem>>, vector<1x4x128xf32>
    %22 = vector.shape_cast %21 : vector<1x4x128xf32> to vector<4x128xf32>
    %cst_20 = arith.constant dense<0.000000e+00> : vector<64x128xf32>
    %23 = tpu.matmul %20, %22, %cst_20 {dimension_numbers = #tpu.dot_dimension_numbers<[1], [0], [0], [1], [0, 0, 1, 1], [], []>} : vector<64x4xf32>, vector<4x128xf32>, vector<64x128xf32> -> vector<64x128xf32>
    %24 = arith.addf %16, %23 : vector<64x128xf32>
    %c2_21 = arith.constant 2 : index
    %c0_22 = arith.constant 0 : index
    %c0_23 = arith.constant 0 : index
    %c0_24 = arith.constant 0 : index
    %25 = vector.load %arg1[%c2_21, %c0_22, %c0_23, %c0_24] : memref<4x9x9x4xbf16, #tpu.memory_space<vmem>>, vector<1x8x8x4xbf16>
    %26 = vector.shape_cast %25 : vector<1x8x8x4xbf16> to vector<8x8x4xbf16>
    %27 = arith.extf %26 : vector<8x8x4xbf16> to vector<8x8x4xf32>
    %28 = vector.shape_cast %27 : vector<8x8x4xf32> to vector<64x4xf32>
    %c3 = arith.constant 3 : index
    %c0_25 = arith.constant 0 : index
    %c0_26 = arith.constant 0 : index
    %29 = vector.load %arg2[%c3, %c0_25, %c0_26] : memref<9x4x128xf32, #tpu.memory_space<vmem>>, vector<1x4x128xf32>
    %30 = vector.shape_cast %29 : vector<1x4x128xf32> to vector<4x128xf32>
    %cst_27 = arith.constant dense<0.000000e+00> : vector<64x128xf32>
    %31 = tpu.matmul %28, %30, %cst_27 {dimension_numbers = #tpu.dot_dimension_numbers<[1], [0], [0], [1], [0, 0, 1, 1], [], []>} : vector<64x4xf32>, vector<4x128xf32>, vector<64x128xf32> -> vector<64x128xf32>
    %32 = arith.addf %24, %31 : vector<64x128xf32>
    %c3_28 = arith.constant 3 : index
    %c0_29 = arith.constant 0 : index
    %c0_30 = arith.constant 0 : index
    %c0_31 = arith.constant 0 : index
    %33 = vector.load %arg1[%c3_28, %c0_29, %c0_30, %c0_31] : memref<4x9x9x4xbf16, #tpu.memory_space<vmem>>, vector<1x8x8x4xbf16>
    %34 = vector.shape_cast %33 : vector<1x8x8x4xbf16> to vector<8x8x4xbf16>
    %35 = arith.extf %34 : vector<8x8x4xbf16> to vector<8x8x4xf32>
    %36 = vector.shape_cast %35 : vector<8x8x4xf32> to vector<64x4xf32>
    %c4 = arith.constant 4 : index
    %c0_32 = arith.constant 0 : index
    %c0_33 = arith.constant 0 : index
    %37 = vector.load %arg2[%c4, %c0_32, %c0_33] : memref<9x4x128xf32, #tpu.memory_space<vmem>>, vector<1x4x128xf32>
    %38 = vector.shape_cast %37 : vector<1x4x128xf32> to vector<4x128xf32>
    %cst_34 = arith.constant dense<0.000000e+00> : vector<64x128xf32>
    %39 = tpu.matmul %36, %38, %cst_34 {dimension_numbers = #tpu.dot_dimension_numbers<[1], [0], [0], [1], [0, 0, 1, 1], [], []>} : vector<64x4xf32>, vector<4x128xf32>, vector<64x128xf32> -> vector<64x128xf32>
    %40 = arith.addf %32, %39 : vector<64x128xf32>
    %c2_35 = arith.constant 2 : index
    %c0_36 = arith.constant 0 : index
    %c1_37 = arith.constant 1 : index
    %c0_38 = arith.constant 0 : index
    %41 = vector.load %arg1[%c2_35, %c0_36, %c1_37, %c0_38] : memref<4x9x9x4xbf16, #tpu.memory_space<vmem>>, vector<1x8x8x4xbf16>
    %42 = vector.shape_cast %41 : vector<1x8x8x4xbf16> to vector<8x8x4xbf16>
    %43 = arith.extf %42 : vector<8x8x4xbf16> to vector<8x8x4xf32>
    %44 = vector.shape_cast %43 : vector<8x8x4xf32> to vector<64x4xf32>
    %c5 = arith.constant 5 : index
    %c0_39 = arith.constant 0 : index
    %c0_40 = arith.constant 0 : index
    %45 = vector.load %arg2[%c5, %c0_39, %c0_40] : memref<9x4x128xf32, #tpu.memory_space<vmem>>, vector<1x4x128xf32>
    %46 = vector.shape_cast %45 : vector<1x4x128xf32> to vector<4x128xf32>
    %cst_41 = arith.constant dense<0.000000e+00> : vector<64x128xf32>
    %47 = tpu.matmul %44, %46, %cst_41 {dimension_numbers = #tpu.dot_dimension_numbers<[1], [0], [0], [1], [0, 0, 1, 1], [], []>} : vector<64x4xf32>, vector<4x128xf32>, vector<64x128xf32> -> vector<64x128xf32>
    %48 = arith.addf %40, %47 : vector<64x128xf32>
    %c0_42 = arith.constant 0 : index
    %c1_43 = arith.constant 1 : index
    %c0_44 = arith.constant 0 : index
    %c0_45 = arith.constant 0 : index
    %49 = vector.load %arg1[%c0_42, %c1_43, %c0_44, %c0_45] : memref<4x9x9x4xbf16, #tpu.memory_space<vmem>>, vector<1x8x8x4xbf16>
    %50 = vector.shape_cast %49 : vector<1x8x8x4xbf16> to vector<8x8x4xbf16>
    %51 = arith.extf %50 : vector<8x8x4xbf16> to vector<8x8x4xf32>
    %52 = vector.shape_cast %51 : vector<8x8x4xf32> to vector<64x4xf32>
    %c6 = arith.constant 6 : index
    %c0_46 = arith.constant 0 : index
    %c0_47 = arith.constant 0 : index
    %53 = vector.load %arg2[%c6, %c0_46, %c0_47] : memref<9x4x128xf32, #tpu.memory_space<vmem>>, vector<1x4x128xf32>
    %54 = vector.shape_cast %53 : vector<1x4x128xf32> to vector<4x128xf32>
    %cst_48 = arith.constant dense<0.000000e+00> : vector<64x128xf32>
    %55 = tpu.matmul %52, %54, %cst_48 {dimension_numbers = #tpu.dot_dimension_numbers<[1], [0], [0], [1], [0, 0, 1, 1], [], []>} : vector<64x4xf32>, vector<4x128xf32>, vector<64x128xf32> -> vector<64x128xf32>
    %56 = arith.addf %48, %55 : vector<64x128xf32>
    %c1_49 = arith.constant 1 : index
    %c1_50 = arith.constant 1 : index
    %c0_51 = arith.constant 0 : index
    %c0_52 = arith.constant 0 : index
    %57 = vector.load %arg1[%c1_49, %c1_50, %c0_51, %c0_52] : memref<4x9x9x4xbf16, #tpu.memory_space<vmem>>, vector<1x8x8x4xbf16>
    %58 = vector.shape_cast %57 : vector<1x8x8x4xbf16> to vector<8x8x4xbf16>
    %59 = arith.extf %58 : vector<8x8x4xbf16> to vector<8x8x4xf32>
    %60 = vector.shape_cast %59 : vector<8x8x4xf32> to vector<64x4xf32>
    %c7 = arith.constant 7 : index
    %c0_53 = arith.constant 0 : index
    %c0_54 = arith.constant 0 : index
    %61 = vector.load %arg2[%c7, %c0_53, %c0_54] : memref<9x4x128xf32, #tpu.memory_space<vmem>>, vector<1x4x128xf32>
    %62 = vector.shape_cast %61 : vector<1x4x128xf32> to vector<4x128xf32>
    %cst_55 = arith.constant dense<0.000000e+00> : vector<64x128xf32>
    %63 = tpu.matmul %60, %62, %cst_55 {dimension_numbers = #tpu.dot_dimension_numbers<[1], [0], [0], [1], [0, 0, 1, 1], [], []>} : vector<64x4xf32>, vector<4x128xf32>, vector<64x128xf32> -> vector<64x128xf32>
    %64 = arith.addf %56, %63 : vector<64x128xf32>
    %c0_56 = arith.constant 0 : index
    %c1_57 = arith.constant 1 : index
    %c1_58 = arith.constant 1 : index
    %c0_59 = arith.constant 0 : index
    %65 = vector.load %arg1[%c0_56, %c1_57, %c1_58, %c0_59] : memref<4x9x9x4xbf16, #tpu.memory_space<vmem>>, vector<1x8x8x4xbf16>
    %66 = vector.shape_cast %65 : vector<1x8x8x4xbf16> to vector<8x8x4xbf16>
    %67 = arith.extf %66 : vector<8x8x4xbf16> to vector<8x8x4xf32>
    %68 = vector.shape_cast %67 : vector<8x8x4xf32> to vector<64x4xf32>
    %c8 = arith.constant 8 : index
    %c0_60 = arith.constant 0 : index
    %c0_61 = arith.constant 0 : index
    %69 = vector.load %arg2[%c8, %c0_60, %c0_61] : memref<9x4x128xf32, #tpu.memory_space<vmem>>, vector<1x4x128xf32>
    %70 = vector.shape_cast %69 : vector<1x4x128xf32> to vector<4x128xf32>
    %cst_62 = arith.constant dense<0.000000e+00> : vector<64x128xf32>
    %71 = tpu.matmul %68, %70, %cst_62 {dimension_numbers = #tpu.dot_dimension_numbers<[1], [0], [0], [1], [0, 0, 1, 1], [], []>} : vector<64x4xf32>, vector<4x128xf32>, vector<64x128xf32> -> vector<64x128xf32>
    %72 = arith.addf %64, %71 : vector<64x128xf32>
    %cst_63 = arith.constant 1.000000e+00 : f32
    %73 = vector.broadcast %cst_63 : f32 to vector<1x64xf32>
    %cst_64 = arith.constant dense<0.000000e+00> : vector<1x128xf32>
    %74 = tpu.matmul %73, %72, %cst_64 {dimension_numbers = #tpu.dot_dimension_numbers<[1], [0], [0], [1], [0, 0, 1, 1], [], []>} : vector<1x64xf32>, vector<64x128xf32>, vector<1x128xf32> -> vector<1x128xf32>
    %cst_65 = arith.constant 1.562500e-02 : f32
    %75 = vector.broadcast %cst_65 : f32 to vector<1x128xf32>
    %76 = arith.mulf %74, %75 : vector<1x128xf32>
    %77 = vector.broadcast %76 : vector<1x128xf32> to vector<64x128xf32>
    %78 = arith.subf %72, %77 : vector<64x128xf32>
    %79 = arith.mulf %78, %78 : vector<64x128xf32>
    %cst_66 = arith.constant dense<0.000000e+00> : vector<1x128xf32>
    %80 = tpu.matmul %73, %79, %cst_66 {dimension_numbers = #tpu.dot_dimension_numbers<[1], [0], [0], [1], [0, 0, 1, 1], [], []>} : vector<1x64xf32>, vector<64x128xf32>, vector<1x128xf32> -> vector<1x128xf32>
    %c0_67 = arith.constant 0 : index
    %c0_68 = arith.constant 0 : index
    %c0_69 = arith.constant 0 : index
    %81 = vector.load %arg4[%c0_67, %c0_68, %c0_69] : memref<1x1x128xf32, #tpu.memory_space<vmem>>, vector<1x1x128xf32>
    %82 = vector.shape_cast %81 : vector<1x1x128xf32> to vector<1x128xf32>
    %83 = vector.shape_cast %74 : vector<1x128xf32> to vector<1x1x128xf32>
    tpu.vector_store %arg4[%c0_67, %c0_68, %c0_69], %83 {strides = array<i32>} : memref<1x1x128xf32, #tpu.memory_space<vmem>>, vector<1x1x128xf32>,
    %c0_70 = arith.constant 0 : index
    %c0_71 = arith.constant 0 : index
    %c0_72 = arith.constant 0 : index
    %84 = vector.load %arg5[%c0_70, %c0_71, %c0_72] : memref<1x1x128xf32, #tpu.memory_space<vmem>>, vector<1x1x128xf32>
    %85 = vector.shape_cast %84 : vector<1x1x128xf32> to vector<1x128xf32>
    %86 = vector.shape_cast %80 : vector<1x128xf32> to vector<1x1x128xf32>
    tpu.vector_store %arg5[%c0_70, %c0_71, %c0_72], %86 {strides = array<i32>} : memref<1x1x128xf32, #tpu.memory_space<vmem>>, vector<1x1x128xf32>,
    %87 = tpu.transpose %72, [1, 0] : vector<64x128xf32> -> vector<128x64xf32>
    %88 = arith.truncf %87 : vector<128x64xf32> to vector<128x64xbf16>
    %c0_73 = arith.constant 0 : index
    %c0_74 = arith.constant 0 : index
    %c0_75 = arith.constant 0 : index
    %89 = vector.load %arg3[%c0_73, %c0_74, %c0_75] : memref<1x128x64xbf16, #tpu.memory_space<vmem>>, vector<1x128x64xbf16>
    %90 = vector.shape_cast %89 : vector<1x128x64xbf16> to vector<128x64xbf16>
    %91 = vector.shape_cast %88 : vector<128x64xbf16> to vector<1x128x64xbf16>
    tpu.vector_store %arg3[%c0_73, %c0_74, %c0_75], %91 {strides = array<i32>} : memref<1x128x64xbf16, #tpu.memory_space<vmem>>, vector<1x128x64xbf16>,
    return
  }
  func.func @transform_0(%arg0: i32) -> (i32, i32, i32, i32) {
    %c0_i32 = arith.constant 0 : i32
    %c0_i32_0 = arith.constant 0 : i32
    %c0_i32_1 = arith.constant 0 : i32
    %c0_i32_2 = arith.constant 0 : i32
    return %arg0, %c0_i32, %c0_i32_0, %c0_i32_1 : i32, i32, i32, i32
  }
  func.func @transform_1(%arg0: i32) -> (i32, i32, i32) {
    %c0_i32 = arith.constant 0 : i32
    %c0_i32_0 = arith.constant 0 : i32
    %c0_i32_1 = arith.constant 0 : i32
    %c0_i32_2 = arith.constant 0 : i32
    return %c0_i32, %c0_i32_0, %c0_i32_1 : i32, i32, i32
  }
  func.func @transform_2(%arg0: i32) -> (i32, i32, i32) {
    %c0_i32 = arith.constant 0 : i32
    %c0_i32_0 = arith.constant 0 : i32
    %c0_i32_1 = arith.constant 0 : i32
    return %arg0, %c0_i32, %c0_i32_0 : i32, i32, i32
  }
  func.func @transform_3(%arg0: i32) -> (i32, i32, i32) {
    %c0_i32 = arith.constant 0 : i32
    %c0_i32_0 = arith.constant 0 : i32
    %c0_i32_1 = arith.constant 0 : i32
    return %arg0, %c0_i32, %c0_i32_0 : i32, i32, i32
  }
  func.func @transform_4(%arg0: i32) -> (i32, i32, i32) {
    %c0_i32 = arith.constant 0 : i32
    %c0_i32_0 = arith.constant 0 : i32
    %c0_i32_1 = arith.constant 0 : i32
    return %arg0, %c0_i32, %c0_i32_0 : i32, i32, i32
  }
}

module attributes {stable_mosaic.version = 11 : i64} {
  func.func @_bn_lrelu_kernel(%arg0: i32, %arg1: memref<1x128x64xbf16, #tpu.memory_space<vmem>>, %arg2: memref<128x1xf32, #tpu.memory_space<vmem>>, %arg3: memref<128x1xf32, #tpu.memory_space<vmem>>, %arg4: memref<1x8x64xf32, #tpu.memory_space<vmem>>) attributes {dimension_semantics = [#tpu.dimension_semantics<parallel>], iteration_bounds = array<i64: 2>, scalar_prefetch = 0 : i64, scratch_operands = 0 : i64, tpu.core_type = #tpu.core_type<tc>, window_params = [{transform_indices = @transform_0, window_bounds = array<i64: 1, 128, 64>}, {pipeline_mode = #tpu.pipeline_mode<synchronous>, transform_indices = @transform_1, window_bounds = array<i64: 128, 1>}, {pipeline_mode = #tpu.pipeline_mode<synchronous>, transform_indices = @transform_2, window_bounds = array<i64: 128, 1>}, {transform_indices = @transform_3, window_bounds = array<i64: 1, 8, 64>}]} {
    %c0 = arith.constant 0 : index
    %c0_0 = arith.constant 0 : index
    %c0_1 = arith.constant 0 : index
    %0 = vector.load %arg1[%c0, %c0_0, %c0_1] : memref<1x128x64xbf16, #tpu.memory_space<vmem>>, vector<1x128x64xbf16>
    %1 = vector.shape_cast %0 : vector<1x128x64xbf16> to vector<128x64xbf16>
    %2 = arith.extf %1 : vector<128x64xbf16> to vector<128x64xf32>
    %c0_2 = arith.constant 0 : index
    %c0_3 = arith.constant 0 : index
    %3 = vector.load %arg2[%c0_2, %c0_3] : memref<128x1xf32, #tpu.memory_space<vmem>>, vector<128x1xf32>
    %4 = vector.broadcast %3 : vector<128x1xf32> to vector<128x64xf32>
    %5 = arith.mulf %2, %4 : vector<128x64xf32>
    %c0_4 = arith.constant 0 : index
    %c0_5 = arith.constant 0 : index
    %6 = vector.load %arg3[%c0_4, %c0_5] : memref<128x1xf32, #tpu.memory_space<vmem>>, vector<128x1xf32>
    %7 = vector.broadcast %6 : vector<128x1xf32> to vector<128x64xf32>
    %8 = arith.addf %5, %7 : vector<128x64xf32>
    %cst = arith.constant 0.000000e+00 : f32
    %9 = vector.broadcast %cst : f32 to vector<128x64xf32>
    %10 = arith.cmpf ogt, %8, %9 : vector<128x64xf32>
    %cst_6 = arith.constant 0.00999999977 : f32
    %11 = vector.broadcast %cst_6 : f32 to vector<128x64xf32>
    %12 = arith.mulf %11, %8 : vector<128x64xf32>
    %13 = arith.select %10, %8, %12 : vector<128x64xi1>, vector<128x64xf32>
    %14 = vector.extract_strided_slice %13 {offsets = [0, 0], sizes = [8, 64], strides = [1, 1]} : vector<128x64xf32> to vector<8x64xf32>
    %c0_7 = arith.constant 0 : index
    %c0_8 = arith.constant 0 : index
    %c0_9 = arith.constant 0 : index
    %15 = vector.load %arg4[%c0_7, %c0_8, %c0_9] : memref<1x8x64xf32, #tpu.memory_space<vmem>>, vector<1x8x64xf32>
    %16 = vector.shape_cast %15 : vector<1x8x64xf32> to vector<8x64xf32>
    %17 = vector.shape_cast %14 : vector<8x64xf32> to vector<1x8x64xf32>
    tpu.vector_store %arg4[%c0_7, %c0_8, %c0_9], %17 {strides = array<i32>} : memref<1x8x64xf32, #tpu.memory_space<vmem>>, vector<1x8x64xf32>,
    return
  }
  func.func @transform_0(%arg0: i32) -> (i32, i32, i32) {
    %c0_i32 = arith.constant 0 : i32
    %c0_i32_0 = arith.constant 0 : i32
    %c0_i32_1 = arith.constant 0 : i32
    return %arg0, %c0_i32, %c0_i32_0 : i32, i32, i32
  }
  func.func @transform_1(%arg0: i32) -> (i32, i32) {
    %c0_i32 = arith.constant 0 : i32
    %c0_i32_0 = arith.constant 0 : i32
    %c0_i32_1 = arith.constant 0 : i32
    return %c0_i32, %c0_i32_0 : i32, i32
  }
  func.func @transform_2(%arg0: i32) -> (i32, i32) {
    %c0_i32 = arith.constant 0 : i32
    %c0_i32_0 = arith.constant 0 : i32
    %c0_i32_1 = arith.constant 0 : i32
    return %c0_i32, %c0_i32_0 : i32, i32
  }
  func.func @transform_3(%arg0: i32) -> (i32, i32, i32) {
    %c0_i32 = arith.constant 0 : i32
    %c0_i32_0 = arith.constant 0 : i32
    %c0_i32_1 = arith.constant 0 : i32
    return %arg0, %c0_i32, %c0_i32_0 : i32, i32, i32
  }
}

</mosaic_0001>

<llo_original>
// kernel: downsample_block.3
$region0: #{downsample_block.3}
  #allocation0 [shape = 'u32[]', space=smem, size = 0x4, offset = 0x4, fixed_abs, tag = 'smem constant byte address 0x4 - core index']
  #allocation1 [shape = 'u32[144,128]{1,0:T(1,128)}', space=vmem, size = 0x12000, scoped, tag = 'internal scratch']
  %s0 = inlined_call_operand.vmem [shape: bf16[2,128,64], index: 0, kind: input, shape index: {}]
  %s1 = inlined_call_operand.vmem [shape: f32[128,1], index: 1, kind: input, shape index: {}]
  %s2 = inlined_call_operand.vmem [shape: f32[128,1], index: 2, kind: input, shape index: {}]
  %s3 = inlined_call_operand.vmem [shape: f32[2,8,64], index: 3, kind: output, shape index: {}]
  %s4 = sld [smem:[#allocation0]]
  $region45: #{downsample_block.3} parent=0
    _
  %s6 = ssub.s32 1, %s4
  %s7 = scalar_select 0, %s6, %s4
  loop: start=0, step=1, limit=4
  $region2: #{downsample_block.3} parent=0 // loop_pre_header
    _
  $region3: #{downsample_block.3} parent=0 // loop_header
    %s9 = sphi 0, %s13
    %p10 = scmp.ge.s32.totalorder %s9, 4
    %s19 = sphi 0, %s21
    %s22 = sphi 0, %s19
    %s23 = sphi 0, %s22
    %s39 = sphi 0, %s23
    %s43 = sphi 0, %s43
    %s45 = sphi 0, %s43
    %s46 = sphi 0, %s45
    %s60 = sphi 0, %s46
    %s64 = sphi 0, %s64
    %s66 = sphi 0, %s64
    %s67 = sphi 0, %s66
    %s81 = sphi 0, %s67
    %s87 = sphi 0, %s89
    %s90 = sphi 0, %s87
    %s91 = sphi 0, %s90
    %s107 = sphi 0, %s91
  $region4: #{downsample_block.3} parent=0 // loop_header_branch
    %12 = sbr.rel (%p10) target = $region8
  $region5: #{downsample_block.3} parent=0 // loop_body
    %s14 = ssub.s32 %s9, 1
    %s15 = ssub.s32 %s9, 2
    %s16 = sadd.s32 %s9, 1
    %s17 = ssub.s32 %s9, %s16
    %p18 = scmp.eq.s32.totalorder %s17, 0
    %s20 = sadd.s32 %s19, 1
    %s21 = scalar_select %p18, %s19, %s20
    %p24 = pneg %p18
    %p25 = scmp.eq.s32.totalorder %s9, 1
    %p26 = por %p24, %p25
    %p27 = scmp.ne.s32.totalorder %s19, %s22
    %p28 = scmp.eq.s32.totalorder %s9, 0
    %p29 = por %p27, %p28
    %p30 = scmp.ne.s32.totalorder %s19, %s22
    %p31 = scmp.eq.s32.totalorder %s14, 1
    %p32 = por %p30, %p31
    %p33 = scmp.ne.s32.totalorder %s22, %s23
    %p34 = scmp.eq.s32.totalorder %s14, 0
    %p35 = por %p33, %p34
    %p36 = scmp.ne.s32.totalorder %s22, %s23
    %p37 = scmp.eq.s32.totalorder %s15, 1
    %p38 = por %p36, %p37
    %p40 = scmp.ne.s32.totalorder %s23, %s39
    %p41 = scmp.eq.s32.totalorder %s15, 0
    %p42 = por %p40, %p41
    %s44 = sadd.s32 %s43, 1
    %p47 = scmp.eq.s32.totalorder %s9, 1
    %p48 = scmp.ne.s32.totalorder %s43, %s45
    %p49 = scmp.eq.s32.totalorder %s9, 0
    %p50 = por %p48, %p49
    %p51 = scmp.ne.s32.totalorder %s43, %s45
    %p52 = scmp.eq.s32.totalorder %s14, 1
    %p53 = por %p51, %p52
    %p54 = scmp.ne.s32.totalorder %s45, %s46
    %p55 = scmp.eq.s32.totalorder %s14, 0
    %p56 = por %p54, %p55
    %p57 = scmp.ne.s32.totalorder %s45, %s46
    %p58 = scmp.eq.s32.totalorder %s15, 1
    %p59 = por %p57, %p58
    %p61 = scmp.ne.s32.totalorder %s46, %s60
    %p62 = scmp.eq.s32.totalorder %s15, 0
    %p63 = por %p61, %p62
    %s65 = sadd.s32 %s64, 1
    %p68 = scmp.eq.s32.totalorder %s9, 1
    %p69 = scmp.ne.s32.totalorder %s64, %s66
    %p70 = scmp.eq.s32.totalorder %s9, 0
    %p71 = por %p69, %p70
    %p72 = scmp.ne.s32.totalorder %s64, %s66
    %p73 = scmp.eq.s32.totalorder %s14, 1
    %p74 = por %p72, %p73
    %p75 = scmp.ne.s32.totalorder %s66, %s67
    %p76 = scmp.eq.s32.totalorder %s14, 0
    %p77 = por %p75, %p76
    %p78 = scmp.ne.s32.totalorder %s66, %s67
    %p79 = scmp.eq.s32.totalorder %s15, 1
    %p80 = por %p78, %p79
    %p82 = scmp.ne.s32.totalorder %s67, %s81
    %p83 = scmp.eq.s32.totalorder %s15, 0
    %p84 = por %p82, %p83
    %s85 = ssub.s32 %s9, %s16
    %p86 = scmp.eq.s32.totalorder %s85, 0
    %s88 = sadd.s32 %s87, 1
    %s89 = scalar_select %p86, %s87, %s88
    %p92 = pneg %p86
    %p93 = scmp.eq.s32.totalorder %s9, 1
    %p94 = por %p92, %p93
    %p95 = scmp.ne.s32.totalorder %s87, %s90
    %p96 = scmp.eq.s32.totalorder %s9, 0
    %p97 = por %p95, %p96
    %p98 = scmp.ne.s32.totalorder %s87, %s90
    %p99 = scmp.eq.s32.totalorder %s14, 1
    %p100 = por %p98, %p99
    %p101 = scmp.ne.s32.totalorder %s90, %s91
    %p102 = scmp.eq.s32.totalorder %s14, 0
    %p103 = por %p101, %p102
    %p104 = scmp.ne.s32.totalorder %s90, %s91
    %p105 = scmp.eq.s32.totalorder %s15, 1
    %p106 = por %p104, %p105
    %p108 = scmp.ne.s32.totalorder %s91, %s107
    %p109 = scmp.eq.s32.totalorder %s15, 0
    %p110 = por %p108, %p109
    %p111 = scmp.le.s32.totalorder 1, %s9
    %p112 = scmp.lt.s32.totalorder %s9, 3
    %p113 = pnand %p111, %p112
    %p114 = pneg %p113
    // Predicated region
    $region9: #{downsample_block.3} parent=5 // pred_check
      _
    $region10: #{downsample_block.3} parent=5 // pred_check_branch
      %116 = sbr.rel (%p113) target = $region12
    $region11: #{downsample_block.3} parent=5 // pred_region
      %s117 = ssub.s32 %s9, 1
      // Predicated region
      $region13: #{downsample_block.3} parent=11 // pred_check
        %p118 = pneg %p56
      $region14: #{downsample_block.3} parent=11 // pred_check_branch
        %120 = sbr.rel (%p118) target = $region16
      $region15: #{downsample_block.3} parent=11 // pred_region
        _
      $region16: #{downsample_block.3} parent=11 // pred_fallthru
        _
      // Predicated region
      $region17: #{downsample_block.3} parent=11 // pred_check
        %p121 = pneg %p77
      $region18: #{downsample_block.3} parent=11 // pred_check_branch
        %123 = sbr.rel (%p121) target = $region20
      $region19: #{downsample_block.3} parent=11 // pred_region
        _
      $region20: #{downsample_block.3} parent=11 // pred_fallthru
        _
    $region12: #{downsample_block.3} parent=5 // pred_fallthru
      _
    %p124 = scmp.lt.s32.totalorder %s9, 2
    // Predicated region
    $region21: #{downsample_block.3} parent=5 // pred_check
      %p125 = pneg %p124
    $region22: #{downsample_block.3} parent=5 // pred_check_branch
      %127 = sbr.rel (%p125) target = $region24
    $region23: #{downsample_block.3} parent=5 // pred_region
      // Predicated region
      $region25: #{downsample_block.3} parent=23 // pred_check
        %p128 = pneg %p29
      $region26: #{downsample_block.3} parent=23 // pred_check_branch
        %130 = sbr.rel (%p128) target = $region28
      $region27: #{downsample_block.3} parent=23 // pred_region
        %p131 = scmp.lt.s32.totalorder %s9, 1
        %s132 = scalar_select %p131, %s9, 1
        %s133 = smul.addr %s132, 16
        %s134 = smul.addr %s133, 4
        %s135 = scalar_lea.vmem %s0, %s134
      $region28: #{downsample_block.3} parent=23 // pred_fallthru
        _
    $region24: #{downsample_block.3} parent=5 // pred_fallthru
      _
    %p136 = scmp.le.s32.totalorder 1, %s9
    %p137 = scmp.lt.s32.totalorder %s9, 3
    %p138 = pnand %p136, %p137
    %p139 = pneg %p138
    // Predicated region
    $region29: #{downsample_block.3} parent=5 // pred_check
      _
    $region30: #{downsample_block.3} parent=5 // pred_check_branch
      %141 = sbr.rel (%p138) target = $region32
    $region31: #{downsample_block.3} parent=5 // pred_region
      %s142 = ssub.s32 %s9, 1
      %p143 = scmp.lt.s32.totalorder %s14, 1
      %s144 = scalar_select %p143, %s14, 1
      %s145 = smul.addr %s144, 16
      %s146 = smul.addr %s145, 4
      %s147 = scalar_lea.vmem %s0, %s146
      %p148 = pneg %p35
      %p149 = pneg %p32
      %p150 = pneg %p56
      %p151 = pneg %p53
      %p152 = pneg %p77
      %p153 = pneg %p74
      %p154 = pneg %p103
      %p155 = pneg %p100
      %p156 = scmp.lt.s32.totalorder %s14, 1
      %s157 = scalar_select %p156, %s14, 1
      %s158 = smul.addr %s157, 8
      %s159 = scalar_lea.vmem %s3, %s158
      %p160 = scmp.lt.s32.totalorder %s14, 1
      %s161 = scalar_select %p160, %s14, 1
      %s162 = smul.addr %s161, 16
      %s163 = smul.addr %s162, 4
      %s164 = scalar_lea.vmem %s0, %s163
      %p165 = scmp.lt.s32.totalorder %s14, 1
      %s166 = scalar_select %p165, %s14, 1
      %s167 = smul.addr %s166, 8
      %s168 = scalar_lea.vmem %s3, %s167
      %v169 = vld [vmem:[%s164] sm:$0xf]
      %v170 = vunpack.c.l.bf16 %v169
      %v171 = vld [vmem:[%s1] sm:$0xff]
      %173 = vset.pattern.permute.xlu0 0
      %174 = vperm.xlu0 %173, %v171
      %v175 = vpop.permute.xlu0 %174
      %v177 = vmul.f32 %v170, %v175
      %v178 = vld [vmem:[%s2] sm:$0xff]
      %180 = vset.pattern.permute.xlu0 0
      %181 = vperm.xlu0 %180, %v178
      %v182 = vpop.permute.xlu0 %181
      %v184 = vadd.f32 %v177, %v182
      %vm185 = vcmp.gt.f32.partialorder %v184, 0.0
      %v186 = vmul.f32 %v184, 0.01
      %v187 = vsel %vm185, %v184, %v186
      %vm188 = vcmask 523264
      %189 = vst.msk [vmem:[%s168] sm:$0xff] %vm188, %v187
      %p190 = scmp.lt.s32.totalorder %s14, 1
      %s191 = scalar_select %p190, %s14, 1
      %s192 = smul.addr %s191, 8
      %s193 = scalar_lea.vmem %s3, %s192
      // Predicated region
      $region33: #{downsample_block.3} parent=31 // pred_check
        %p194 = pneg %p100
      $region34: #{downsample_block.3} parent=31 // pred_check_branch
        %196 = sbr.rel (%p194) target = $region36
      $region35: #{downsample_block.3} parent=31 // pred_region
        _
      $region36: #{downsample_block.3} parent=31 // pred_fallthru
        _
    $region32: #{downsample_block.3} parent=5 // pred_fallthru
      _
    %p197 = scmp.le.s32.totalorder 2, %s9
    // Predicated region
    $region37: #{downsample_block.3} parent=5 // pred_check
      %p198 = pneg %p197
    $region38: #{downsample_block.3} parent=5 // pred_check_branch
      %200 = sbr.rel (%p198) target = $region40
    $region39: #{downsample_block.3} parent=5 // pred_region
      %s201 = ssub.s32 %s9, 2
      // Predicated region
      $region41: #{downsample_block.3} parent=39 // pred_check
        %p202 = pneg %p106
      $region42: #{downsample_block.3} parent=39 // pred_check_branch
        %204 = sbr.rel (%p202) target = $region44
      $region43: #{downsample_block.3} parent=39 // pred_region
        %p205 = scmp.lt.s32.totalorder %s15, 1
        %s206 = scalar_select %p205, %s15, 1
        %s207 = smul.addr %s206, 8
        %s208 = scalar_lea.vmem %s3, %s207
      $region44: #{downsample_block.3} parent=39 // pred_fallthru
        _
    $region40: #{downsample_block.3} parent=5 // pred_fallthru
      _
  $region6: #{downsample_block.3} parent=0 // loop_footer
    %s13 = sadd.s32 1, %s9
  $region7: #{downsample_block.3} parent=0 // loop_footer_branch
    %8 = sbr.rel target = $region3
  $region8: #{downsample_block.3} parent=0 // loop_exit
    _

// kernel: downsample_block.2
$region0: #{downsample_block.2}
  #allocation0 [shape = 'u32[]', space=smem, size = 0x4, offset = 0x4, fixed_abs, tag = 'smem constant byte address 0x4 - core index']
  #allocation1 [shape = 'u32[144,128]{1,0:T(1,128)}', space=vmem, size = 0x12000, scoped, tag = 'internal scratch']
  %s0 = inlined_call_operand.vmem [shape: bf16[8,9,9,4], index: 0, kind: input, shape index: {}]
  %s1 = inlined_call_operand.vmem [shape: f32[9,4,128], index: 1, kind: input, shape index: {}]
  %s2 = inlined_call_operand.vmem [shape: bf16[2,128,64], index: 2, kind: output, shape index: {0}]
  %s3 = inlined_call_operand.vmem [shape: f32[2,1,128], index: 3, kind: output, shape index: {1}]
  %s4 = inlined_call_operand.vmem [shape: f32[2,1,128], index: 4, kind: output, shape index: {2}]
  %5 = xla_tuple %s2, %s3, %s4
  %s6 = sld [smem:[#allocation0]]
  $region57: #{downsample_block.2} parent=0
    _
  %s8 = ssub.s32 1, %s6
  %s9 = scalar_select 0, %s8, %s6
  loop: start=0, step=1, limit=4
  $region2: #{downsample_block.2} parent=0 // loop_pre_header
    _
  $region3: #{downsample_block.2} parent=0 // loop_header
    %s11 = sphi 0, %s15
    %p12 = scmp.ge.s32.totalorder %s11, 4
    %s21 = sphi 0, %s23
    %s24 = sphi 0, %s21
    %s25 = sphi 0, %s24
    %s41 = sphi 0, %s25
    %s45 = sphi 0, %s45
    %s47 = sphi 0, %s45
    %s48 = sphi 0, %s47
    %s62 = sphi 0, %s48
    %s68 = sphi 0, %s70
    %s71 = sphi 0, %s68
    %s72 = sphi 0, %s71
    %s88 = sphi 0, %s72
    %s94 = sphi 0, %s96
    %s97 = sphi 0, %s94
    %s98 = sphi 0, %s97
    %s114 = sphi 0, %s98
    %s120 = sphi 0, %s122
    %s123 = sphi 0, %s120
    %s124 = sphi 0, %s123
    %s140 = sphi 0, %s124
  $region4: #{downsample_block.2} parent=0 // loop_header_branch
    %14 = sbr.rel (%p12) target = $region8
  $region5: #{downsample_block.2} parent=0 // loop_body
    %s16 = ssub.s32 %s11, 1
    %s17 = ssub.s32 %s11, 2
    %s18 = sadd.s32 %s11, 1
    %s19 = ssub.s32 %s11, %s18
    %p20 = scmp.eq.s32.totalorder %s19, 0
    %s22 = sadd.s32 %s21, 1
    %s23 = scalar_select %p20, %s21, %s22
    %p26 = pneg %p20
    %p27 = scmp.eq.s32.totalorder %s11, 1
    %p28 = por %p26, %p27
    %p29 = scmp.ne.s32.totalorder %s21, %s24
    %p30 = scmp.eq.s32.totalorder %s11, 0
    %p31 = por %p29, %p30
    %p32 = scmp.ne.s32.totalorder %s21, %s24
    %p33 = scmp.eq.s32.totalorder %s16, 1
    %p34 = por %p32, %p33
    %p35 = scmp.ne.s32.totalorder %s24, %s25
    %p36 = scmp.eq.s32.totalorder %s16, 0
    %p37 = por %p35, %p36
    %p38 = scmp.ne.s32.totalorder %s24, %s25
    %p39 = scmp.eq.s32.totalorder %s17, 1
    %p40 = por %p38, %p39
    %p42 = scmp.ne.s32.totalorder %s25, %s41
    %p43 = scmp.eq.s32.totalorder %s17, 0
    %p44 = por %p42, %p43
    %s46 = sadd.s32 %s45, 1
    %p49 = scmp.eq.s32.totalorder %s11, 1
    %p50 = scmp.ne.s32.totalorder %s45, %s47
    %p51 = scmp.eq.s32.totalorder %s11, 0
    %p52 = por %p50, %p51
    %p53 = scmp.ne.s32.totalorder %s45, %s47
    %p54 = scmp.eq.s32.totalorder %s16, 1
    %p55 = por %p53, %p54
    %p56 = scmp.ne.s32.totalorder %s47, %s48
    %p57 = scmp.eq.s32.totalorder %s16, 0
    %p58 = por %p56, %p57
    %p59 = scmp.ne.s32.totalorder %s47, %s48
    %p60 = scmp.eq.s32.totalorder %s17, 1
    %p61 = por %p59, %p60
    %p63 = scmp.ne.s32.totalorder %s48, %s62
    %p64 = scmp.eq.s32.totalorder %s17, 0
    %p65 = por %p63, %p64
    %s66 = ssub.s32 %s11, %s18
    %p67 = scmp.eq.s32.totalorder %s66, 0
    %s69 = sadd.s32 %s68, 1
    %s70 = scalar_select %p67, %s68, %s69
    %p73 = pneg %p67
    %p74 = scmp.eq.s32.totalorder %s11, 1
    %p75 = por %p73, %p74
    %p76 = scmp.ne.s32.totalorder %s68, %s71
    %p77 = scmp.eq.s32.totalorder %s11, 0
    %p78 = por %p76, %p77
    %p79 = scmp.ne.s32.totalorder %s68, %s71
    %p80 = scmp.eq.s32.totalorder %s16, 1
    %p81 = por %p79, %p80
    %p82 = scmp.ne.s32.totalorder %s71, %s72
    %p83 = scmp.eq.s32.totalorder %s16, 0
    %p84 = por %p82, %p83
    %p85 = scmp.ne.s32.totalorder %s71, %s72
    %p86 = scmp.eq.s32.totalorder %s17, 1
    %p87 = por %p85, %p86
    %p89 = scmp.ne.s32.totalorder %s72, %s88
    %p90 = scmp.eq.s32.totalorder %s17, 0
    %p91 = por %p89, %p90
    %s92 = ssub.s32 %s11, %s18
    %p93 = scmp.eq.s32.totalorder %s92, 0
    %s95 = sadd.s32 %s94, 1
    %s96 = scalar_select %p93, %s94, %s95
    %p99 = pneg %p93
    %p100 = scmp.eq.s32.totalorder %s11, 1
    %p101 = por %p99, %p100
    %p102 = scmp.ne.s32.totalorder %s94, %s97
    %p103 = scmp.eq.s32.totalorder %s11, 0
    %p104 = por %p102, %p103
    %p105 = scmp.ne.s32.totalorder %s94, %s97
    %p106 = scmp.eq.s32.totalorder %s16, 1
    %p107 = por %p105, %p106
    %p108 = scmp.ne.s32.totalorder %s97, %s98
    %p109 = scmp.eq.s32.totalorder %s16, 0
    %p110 = por %p108, %p109
    %p111 = scmp.ne.s32.totalorder %s97, %s98
    %p112 = scmp.eq.s32.totalorder %s17, 1
    %p113 = por %p111, %p112
    %p115 = scmp.ne.s32.totalorder %s98, %s114
    %p116 = scmp.eq.s32.totalorder %s17, 0
    %p117 = por %p115, %p116
    %s118 = ssub.s32 %s11, %s18
    %p119 = scmp.eq.s32.totalorder %s118, 0
    %s121 = sadd.s32 %s120, 1
    %s122 = scalar_select %p119, %s120, %s121
    %p125 = pneg %p119
    %p126 = scmp.eq.s32.totalorder %s11, 1
    %p127 = por %p125, %p126
    %p128 = scmp.ne.s32.totalorder %s120, %s123
    %p129 = scmp.eq.s32.totalorder %s11, 0
    %p130 = por %p128, %p129
    %p131 = scmp.ne.s32.totalorder %s120, %s123
    %p132 = scmp.eq.s32.totalorder %s16, 1
    %p133 = por %p131, %p132
    %p134 = scmp.ne.s32.totalorder %s123, %s124
    %p135 = scmp.eq.s32.totalorder %s16, 0
    %p136 = por %p134, %p135
    %p137 = scmp.ne.s32.totalorder %s123, %s124
    %p138 = scmp.eq.s32.totalorder %s17, 1
    %p139 = por %p137, %p138
    %p141 = scmp.ne.s32.totalorder %s124, %s140
    %p142 = scmp.eq.s32.totalorder %s17, 0
    %p143 = por %p141, %p142
    %p144 = scmp.le.s32.totalorder 1, %s11
    %p145 = scmp.lt.s32.totalorder %s11, 3
    %p146 = pnand %p144, %p145
    %p147 = pneg %p146
    // Predicated region
    $region9: #{downsample_block.2} parent=5 // pred_check
      _
    $region10: #{downsample_block.2} parent=5 // pred_check_branch
      %149 = sbr.rel (%p146) target = $region12
    $region11: #{downsample_block.2} parent=5 // pred_region
      %s150 = ssub.s32 %s11, 1
      // Predicated region
      $region13: #{downsample_block.2} parent=11 // pred_check
        %p151 = pneg %p58
      $region14: #{downsample_block.2} parent=11 // pred_check_branch
        %153 = sbr.rel (%p151) target = $region16
      $region15: #{downsample_block.2} parent=11 // pred_region
        _
      $region16: #{downsample_block.2} parent=11 // pred_fallthru
        _
    $region12: #{downsample_block.2} parent=5 // pred_fallthru
      _
    %p154 = scmp.lt.s32.totalorder %s11, 2
    // Predicated region
    $region17: #{downsample_block.2} parent=5 // pred_check
      %p155 = pneg %p154
    $region18: #{downsample_block.2} parent=5 // pred_check_branch
      %157 = sbr.rel (%p155) target = $region20
    $region19: #{downsample_block.2} parent=5 // pred_region
      // Predicated region
      $region21: #{downsample_block.2} parent=19 // pred_check
        %p158 = pneg %p31
      $region22: #{downsample_block.2} parent=19 // pred_check_branch
        %160 = sbr.rel (%p158) target = $region24
      $region23: #{downsample_block.2} parent=19 // pred_region
        %s161 = smul.u32 4, %s11
        %p162 = scmp.lt.s32.totalorder %s161, 7
        %s163 = scalar_select %p162, %s161, 7
        %s164 = smul.addr %s163, 18
        %s165 = smul.addr %s164, 4
        %s166 = scalar_lea.vmem %s0, %s165
        %s167 = smul.u32 4, %s11
      $region24: #{downsample_block.2} parent=19 // pred_fallthru
        _
    $region20: #{downsample_block.2} parent=5 // pred_fallthru
      _
    %p168 = scmp.le.s32.totalorder 1, %s11
    %p169 = scmp.lt.s32.totalorder %s11, 3
    %p170 = pnand %p168, %p169
    %p171 = pneg %p170
    // Predicated region
    $region25: #{downsample_block.2} parent=5 // pred_check
      _
    $region26: #{downsample_block.2} parent=5 // pred_check_branch
      %173 = sbr.rel (%p170) target = $region28
    $region27: #{downsample_block.2} parent=5 // pred_region
      %s174 = ssub.s32 %s11, 1
      %s175 = smul.u32 4, %s16
      %p176 = scmp.lt.s32.totalorder %s175, 7
      %s177 = scalar_select %p176, %s175, 7
      %s178 = smul.addr %s177, 18
      %s179 = smul.addr %s178, 4
      %s180 = scalar_lea.vmem %s0, %s179
      %p181 = pneg %p37
      %p182 = pneg %p34
      %p183 = pneg %p58
      %p184 = pneg %p55
      %p185 = pneg %p84
      %p186 = pneg %p81
      %p187 = scmp.lt.s32.totalorder %s16, 1
      %s188 = scalar_select %p187, %s16, 1
      %s189 = smul.addr %s188, 16
      %s190 = smul.addr %s189, 4
      %s191 = scalar_lea.vmem %s2, %s190
      %p192 = pneg %p110
      %p193 = pneg %p107
      %p194 = scmp.lt.s32.totalorder %s16, 1
      %s195 = scalar_select %p194, %s16, 1
      %s196 = scalar_lea.vmem %s3, %s195
      %p197 = pneg %p136
      %p198 = pneg %p133
      %p199 = scmp.lt.s32.totalorder %s16, 1
      %s200 = scalar_select %p199, %s16, 1
      %s201 = scalar_lea.vmem %s4, %s200
      %s202 = smul.u32 4, %s16
      %p203 = scmp.lt.s32.totalorder %s202, 7
      %s204 = scalar_select %p203, %s202, 7
      %s205 = smul.addr %s204, 18
      %s206 = smul.addr %s205, 4
      %s207 = scalar_lea.vmem %s0, %s206
      %s208 = smul.u32 4, %s16
      %p209 = scmp.lt.s32.totalorder %s16, 1
      %s210 = scalar_select %p209, %s16, 1
      %s211 = smul.addr %s210, 16
      %s212 = smul.addr %s211, 4
      %s213 = scalar_lea.vmem %s2, %s212
      %p214 = scmp.lt.s32.totalorder %s16, 1
      %s215 = scalar_select %p214, %s16, 1
      %s216 = scalar_lea.vmem %s3, %s215
      %p217 = scmp.lt.s32.totalorder %s16, 1
      %s218 = scalar_select %p217, %s16, 1
      %s219 = scalar_lea.vmem %s4, %s218
      %v220 = vld [vmem:[%s207] sm:$0xf]
      %v221 = vld [vmem:[%s207 + $0x8] sm:$0xf]
      %v222 = vld [vmem:[%s207 + $0x10] sm:$0xf]
      %v223 = vld [vmem:[%s207 + $0x18] sm:$0xf]
      %v224 = vld [vmem:[%s207 + $0x20] sm:$0xf]
      %v225 = vld [vmem:[%s207 + $0x28] sm:$0xf]
      %v226 = vld [vmem:[%s207 + $0x30] sm:$0xf]
      %v227 = vld [vmem:[%s207 + $0x38] sm:$0xf]
      %v228 = vunpack.c.l.bf16 %v220
      %v229 = vunpack.c.l.bf16 %v221
      %v230 = vunpack.c.l.bf16 %v222
      %v231 = vunpack.c.l.bf16 %v223
      %v232 = vunpack.c.l.bf16 %v224
      %v233 = vunpack.c.l.bf16 %v225
      %v234 = vunpack.c.l.bf16 %v226
      %v235 = vunpack.c.l.bf16 %v227
      %v236 = vld [vmem:[%s1] sm:$0xf]
      %s237 = scalar_lea.vmem %s207, 72
      %v238 = vld [vmem:[%s237] sm:$0xf]
      %v239 = vld [vmem:[%s237 + $0x8] sm:$0xf]
      %v240 = vld [vmem:[%s237 + $0x10] sm:$0xf]
      %v241 = vld [vmem:[%s237 + $0x18] sm:$0xf]
      %v242 = vld [vmem:[%s237 + $0x20] sm:$0xf]
      %v243 = vld [vmem:[%s237 + $0x28] sm:$0xf]
      %v244 = vld [vmem:[%s237 + $0x30] sm:$0xf]
      %v245 = vld [vmem:[%s237 + $0x38] sm:$0xf]
      %v246 = vunpack.c.l.bf16 %v238
      %v247 = vunpack.c.l.bf16 %v239
      %v248 = vunpack.c.l.bf16 %v240
      %v249 = vunpack.c.l.bf16 %v241
      %v250 = vunpack.c.l.bf16 %v242
      %v251 = vunpack.c.l.bf16 %v243
      %v252 = vunpack.c.l.bf16 %v244
      %v253 = vunpack.c.l.bf16 %v245
      %s254 = scalar_lea.vmem %s1, 4
      %v255 = vld [vmem:[%s254] sm:$0xf]
      %vm256 = vcmask 31744
      %v258 = vsel %vm256, %v246, 0
      %v261 = vsel %vm256, %v247, 0
      %v264 = vsel %vm256, %v248, 0
      %v267 = vsel %vm256, %v249, 0
      %v270 = vsel %vm256, %v250, 0
      %v273 = vsel %vm256, %v251, 0
      %v276 = vsel %vm256, %v252, 0
      %v279 = vsel %vm256, %v253, 0
      %vm281 = vcmask 1043456
      %v283 = vsel %vm281, %v255, 0
      %285 = vmatprep.subr.mxu0 0.0
      %286 = vmatpush1.msra.mxu0 0.0
      %287 = vmatprep.subr.mxu0 0.0
      %288 = vmatpush1.msra.mxu0 0.0
      %289 = vmatprep.subr.mxu0 0.0
      %290 = vmatpush1.msra.mxu0 0.0
      %291 = vmatprep.subr.mxu0 0.0
      %292 = vmatpush1.msra.mxu0 0.0
      %293 = vmatprep.subr.mxu0 0.0
      %294 = vmatpush1.msra.mxu0 0.0
      %295 = vmatprep.subr.mxu0 0.0
      %296 = vmatpush1.msra.mxu0 0.0
      %297 = vmatprep.subr.mxu0 0.0
      %298 = vmatpush1.msra.mxu0 0.0
      %299 = vmatprep.subr.mxu0 0.0
      %300 = vmatpush1.msra.mxu0 0.0
      %301 = vmatprep.subr.mxu0 0.0
      %302 = vmatpush1.msra.mxu0 0.0
      %303 = vmatprep.subr.mxu0 0.0
      %304 = vmatpush1.msra.mxu0 0.0
      %305 = vmatprep.subr.mxu0 0.0
      %306 = vmatpush1.msra.mxu0 0.0
      %307 = vmatprep.subr.mxu0 0.0
      %308 = vmatpush1.msra.mxu0 0.0
      %309 = vmatprep.subr.mxu0 0.0
      %310 = vmatpush1.msra.mxu0 0.0
      %311 = vmatprep.subr.mxu0 0.0
      %312 = vmatpush1.msra.mxu0 0.0
      %313 = vmatprep.subr.mxu0 0.0
      %314 = vmatpush1.msra.mxu0 0.0
      %315 = vmatprep.subr.mxu0 0.0
      %316 = vmatpush1.msra.mxu0 %v283
      %317 = vmatprep.subr.mxu0 0.0
      %318 = vmatpush2.msra.mxu0 0.0
      %319 = vmatprep.subr.mxu0 0.0
      %320 = vmatpush2.msra.mxu0 0.0
      %321 = vmatprep.subr.mxu0 0.0
      %322 = vmatpush2.msra.mxu0 0.0
      %323 = vmatprep.subr.mxu0 0.0
      %324 = vmatpush2.msra.mxu0 0.0
      %325 = vmatprep.subr.mxu0 0.0
      %326 = vmatpush2.msra.mxu0 0.0
      %327 = vmatprep.subr.mxu0 0.0
      %328 = vmatpush2.msra.mxu0 0.0
      %329 = vmatprep.subr.mxu0 0.0
      %330 = vmatpush2.msra.mxu0 0.0
      %331 = vmatprep.subr.mxu0 0.0
      %332 = vmatpush2.msra.mxu0 0.0
      %333 = vmatprep.subr.mxu0 0.0
      %334 = vmatpush2.msra.mxu0 0.0
      %335 = vmatprep.subr.mxu0 0.0
      %336 = vmatpush2.msra.mxu0 0.0
      %337 = vmatprep.subr.mxu0 0.0
      %338 = vmatpush2.msra.mxu0 0.0
      %339 = vmatprep.subr.mxu0 0.0
      %340 = vmatpush2.msra.mxu0 0.0
      %341 = vmatprep.subr.mxu0 0.0
      %342 = vmatpush2.msra.mxu0 0.0
      %343 = vmatprep.subr.mxu0 0.0
      %344 = vmatpush2.msra.mxu0 0.0
      %345 = vmatprep.subr.mxu0 0.0
      %346 = vmatpush2.msra.mxu0 0.0
      %347 = vmatprep.subr.mxu0 0.0
      %348 = vmatpush2.msra.mxu0 0.0
      %349 = vmatprep.mubr.f32.mxu0 0.0
      %350 = vmatmul.mubr.f32.gmra.mxu0 %v258
      %v351 = vpop.f32.mrf.mxu0
      %v352 = vadd.f32 0.0, %v351
      %v353 = vpop.f32.mrf.mxu0
      %354 = vmatprep.mubr.f32.mxu0 0.0
      %355 = vmatmul.mubr.f32.gmra.mxu0 %v261
      %v356 = vpop.f32.mrf.mxu0
      %v357 = vadd.f32 0.0, %v356
      %v358 = vpop.f32.mrf.mxu0
      %359 = vmatprep.mubr.f32.mxu0 0.0
      %360 = vmatmul.mubr.f32.gmra.mxu0 %v264
      %v361 = vpop.f32.mrf.mxu0
      %v362 = vadd.f32 0.0, %v361
      %v363 = vpop.f32.mrf.mxu0
      %364 = vmatprep.mubr.f32.mxu0 0.0
      %365 = vmatmul.mubr.f32.gmra.mxu0 %v267
      %v366 = vpop.f32.mrf.mxu0
      %v367 = vadd.f32 0.0, %v366
      %v368 = vpop.f32.mrf.mxu0
      %369 = vmatprep.mubr.f32.mxu0 0.0
      %370 = vmatmul.mubr.f32.gmra.mxu0 %v270
      %v371 = vpop.f32.mrf.mxu0
      %v372 = vadd.f32 0.0, %v371
      %v373 = vpop.f32.mrf.mxu0
      %374 = vmatprep.mubr.f32.mxu0 0.0
      %375 = vmatmul.mubr.f32.gmra.mxu0 %v273
      %v376 = vpop.f32.mrf.mxu0
      %v377 = vadd.f32 0.0, %v376
      %v378 = vpop.f32.mrf.mxu0
      %379 = vmatprep.mubr.f32.mxu0 0.0
      %380 = vmatmul.mubr.f32.gmra.mxu0 %v276
      %v381 = vpop.f32.mrf.mxu0
      %v382 = vadd.f32 0.0, %v381
      %v383 = vpop.f32.mrf.mxu0
      %384 = vmatprep.mubr.f32.mxu0 0.0
      %385 = vmatmul.mubr.f32.gmra.mxu0 %v279
      %v386 = vpop.f32.mrf.mxu0
      %v387 = vadd.f32 0.0, %v386
      %v388 = vpop.f32.mrf.mxu0
      %389 = vdwg.mxu0
      %v391 = vsel %vm256, %v228, 0
      %v394 = vsel %vm256, %v229, 0
      %v397 = vsel %vm256, %v230, 0
      %v400 = vsel %vm256, %v231, 0
      %v403 = vsel %vm256, %v232, 0
      %v406 = vsel %vm256, %v233, 0
      %v409 = vsel %vm256, %v234, 0
      %v412 = vsel %vm256, %v235, 0
      %v415 = vsel %vm281, %v236, 0
      %417 = vmatprep.subr.mxu0 0.0
      %418 = vmatpush1.msra.mxu0 0.0
      %419 = vmatprep.subr.mxu0 0.0
      %420 = vmatpush1.msra.mxu0 0.0
      %421 = vmatprep.subr.mxu0 0.0
      %422 = vmatpush1.msra.mxu0 0.0
      %423 = vmatprep.subr.mxu0 0.0
      %424 = vmatpush1.msra.mxu0 0.0
      %425 = vmatprep.subr.mxu0 0.0
      %426 = vmatpush1.msra.mxu0 0.0
      %427 = vmatprep.subr.mxu0 0.0
      %428 = vmatpush1.msra.mxu0 0.0
      %429 = vmatprep.subr.mxu0 0.0
      %430 = vmatpush1.msra.mxu0 0.0
      %431 = vmatprep.subr.mxu0 0.0
      %432 = vmatpush1.msra.mxu0 0.0
      %433 = vmatprep.subr.mxu0 0.0
      %434 = vmatpush1.msra.mxu0 0.0
      %435 = vmatprep.subr.mxu0 0.0
      %436 = vmatpush1.msra.mxu0 0.0
      %437 = vmatprep.subr.mxu0 0.0
      %438 = vmatpush1.msra.mxu0 0.0
      %439 = vmatprep.subr.mxu0 0.0
      %440 = vmatpush1.msra.mxu0 0.0
      %441 = vmatprep.subr.mxu0 0.0
      %442 = vmatpush1.msra.mxu0 0.0
      %443 = vmatprep.subr.mxu0 0.0
      %444 = vmatpush1.msra.mxu0 0.0
      %445 = vmatprep.subr.mxu0 0.0
      %446 = vmatpush1.msra.mxu0 0.0
      %447 = vmatprep.subr.mxu0 0.0
      %448 = vmatpush1.msra.mxu0 %v415
      %449 = vmatprep.subr.mxu0 0.0
      %450 = vmatpush2.msra.mxu0 0.0
      %451 = vmatprep.subr.mxu0 0.0
      %452 = vmatpush2.msra.mxu0 0.0
      %453 = vmatprep.subr.mxu0 0.0
      %454 = vmatpush2.msra.mxu0 0.0
      %455 = vmatprep.subr.mxu0 0.0
      %456 = vmatpush2.msra.mxu0 0.0
      %457 = vmatprep.subr.mxu0 0.0
      %458 = vmatpush2.msra.mxu0 0.0
      %459 = vmatprep.subr.mxu0 0.0
      %460 = vmatpush2.msra.mxu0 0.0
      %461 = vmatprep.subr.mxu0 0.0
      %462 = vmatpush2.msra.mxu0 0.0
      %463 = vmatprep.subr.mxu0 0.0
      %464 = vmatpush2.msra.mxu0 0.0
      %465 = vmatprep.subr.mxu0 0.0
      %466 = vmatpush2.msra.mxu0 0.0
      %467 = vmatprep.subr.mxu0 0.0
      %468 = vmatpush2.msra.mxu0 0.0
      %469 = vmatprep.subr.mxu0 0.0
      %470 = vmatpush2.msra.mxu0 0.0
      %471 = vmatprep.subr.mxu0 0.0
      %472 = vmatpush2.msra.mxu0 0.0
      %473 = vmatprep.subr.mxu0 0.0
      %474 = vmatpush2.msra.mxu0 0.0
      %475 = vmatprep.subr.mxu0 0.0
      %476 = vmatpush2.msra.mxu0 0.0
      %477 = vmatprep.subr.mxu0 0.0
      %478 = vmatpush2.msra.mxu0 0.0
      %479 = vmatprep.subr.mxu0 0.0
      %480 = vmatpush2.msra.mxu0 0.0
      %481 = vmatprep.mubr.f32.mxu0 0.0
      %482 = vmatmul.mubr.f32.gmra.mxu0 %v391
      %v483 = vpop.f32.mrf.mxu0
      %v484 = vadd.f32 %v352, %v483
      %v485 = vpop.f32.mrf.mxu0
      %486 = vmatprep.mubr.f32.mxu0 0.0
      %487 = vmatmul.mubr.f32.gmra.mxu0 %v394
      %v488 = vpop.f32.mrf.mxu0
      %v489 = vadd.f32 %v357, %v488
      %v490 = vpop.f32.mrf.mxu0
      %491 = vmatprep.mubr.f32.mxu0 0.0
      %492 = vmatmul.mubr.f32.gmra.mxu0 %v397
      %v493 = vpop.f32.mrf.mxu0
      %v494 = vadd.f32 %v362, %v493
      %v495 = vpop.f32.mrf.mxu0
      %496 = vmatprep.mubr.f32.mxu0 0.0
      %497 = vmatmul.mubr.f32.gmra.mxu0 %v400
      %v498 = vpop.f32.mrf.mxu0
      %v499 = vadd.f32 %v367, %v498
      %v500 = vpop.f32.mrf.mxu0
      %501 = vmatprep.mubr.f32.mxu0 0.0
      %502 = vmatmul.mubr.f32.gmra.mxu0 %v403
      %v503 = vpop.f32.mrf.mxu0
      %v504 = vadd.f32 %v372, %v503
      %v505 = vpop.f32.mrf.mxu0
      %506 = vmatprep.mubr.f32.mxu0 0.0
      %507 = vmatmul.mubr.f32.gmra.mxu0 %v406
      %v508 = vpop.f32.mrf.mxu0
      %v509 = vadd.f32 %v377, %v508
      %v510 = vpop.f32.mrf.mxu0
      %511 = vmatprep.mubr.f32.mxu0 0.0
      %512 = vmatmul.mubr.f32.gmra.mxu0 %v409
      %v513 = vpop.f32.mrf.mxu0
      %v514 = vadd.f32 %v382, %v513
      %v515 = vpop.f32.mrf.mxu0
      %516 = vmatprep.mubr.f32.mxu0 0.0
      %517 = vmatmul.mubr.f32.gmra.mxu0 %v412
      %v518 = vpop.f32.mrf.mxu0
      %v519 = vadd.f32 %v387, %v518
      %v520 = vpop.f32.mrf.mxu0
      %521 = vdwg.mxu0
      %v522 = vld [vmem:[%s207] sm:$0xf]
      %v523 = vld [vmem:[%s207 + $0x4] sm:$0x1]
      %v524 = vld [vmem:[%s207 + $0x8] sm:$0xf]
      %v525 = vld [vmem:[%s207 + $0xc] sm:$0x1]
      %v526 = vld [vmem:[%s207 + $0x10] sm:$0xf]
      %v527 = vld [vmem:[%s207 + $0x14] sm:$0x1]
      %v528 = vld [vmem:[%s207 + $0x18] sm:$0xf]
      %v529 = vld [vmem:[%s207 + $0x1c] sm:$0x1]
      %v530 = vld [vmem:[%s207 + $0x20] sm:$0xf]
      %v531 = vld [vmem:[%s207 + $0x24] sm:$0x1]
      %v532 = vld [vmem:[%s207 + $0x28] sm:$0xf]
      %v533 = vld [vmem:[%s207 + $0x2c] sm:$0x1]
      %v534 = vld [vmem:[%s207 + $0x30] sm:$0xf]
      %v535 = vld [vmem:[%s207 + $0x34] sm:$0x1]
      %v536 = vld [vmem:[%s207 + $0x38] sm:$0xf]
      %v537 = vld [vmem:[%s207 + $0x3c] sm:$0x1]
      %v538 = vunpack.c.l.bf16 %v522
      %v539 = vunpack.c.l.bf16 %v523
      %v540 = vunpack.c.l.bf16 %v524
      %v541 = vunpack.c.l.bf16 %v525
      %v542 = vunpack.c.l.bf16 %v526
      %v543 = vunpack.c.l.bf16 %v527
      %v544 = vunpack.c.l.bf16 %v528
      %v545 = vunpack.c.l.bf16 %v529
      %v546 = vunpack.c.l.bf16 %v530
      %v547 = vunpack.c.l.bf16 %v531
      %v548 = vunpack.c.l.bf16 %v532
      %v549 = vunpack.c.l.bf16 %v533
      %v550 = vunpack.c.l.bf16 %v534
      %v551 = vunpack.c.l.bf16 %v535
      %v552 = vunpack.c.l.bf16 %v536
      %v553 = vunpack.c.l.bf16 %v537
      %vm570 = vcmask 1046528
      %v571 = vrot.slane %v538, 1
      %v572 = vrot.slane %v539, 1
      %v573 = vsel %vm570, %v571, %v572
      %v574 = vrot.slane %v540, 1
      %v575 = vrot.slane %v541, 1
      %v576 = vsel %vm570, %v574, %v575
      %v577 = vrot.slane %v542, 1
      %v578 = vrot.slane %v543, 1
      %v579 = vsel %vm570, %v577, %v578
      %v580 = vrot.slane %v544, 1
      %v581 = vrot.slane %v545, 1
      %v582 = vsel %vm570, %v580, %v581
      %v583 = vrot.slane %v546, 1
      %v584 = vrot.slane %v547, 1
      %v585 = vsel %vm570, %v583, %v584
      %v586 = vrot.slane %v548, 1
      %v587 = vrot.slane %v549, 1
      %v588 = vsel %vm570, %v586, %v587
      %v589 = vrot.slane %v550, 1
      %v590 = vrot.slane %v551, 1
      %v591 = vsel %vm570, %v589, %v590
      %v592 = vrot.slane %v552, 1
      %v593 = vrot.slane %v553, 1
      %v594 = vsel %vm570, %v592, %v593
      %s595 = scalar_lea.vmem %s1, 8
      %v596 = vld [vmem:[%s595] sm:$0xf]
      %v597 = vsel %vm256, %v573, 0
      %v599 = vsel %vm256, %v576, 0
      %v601 = vsel %vm256, %v579, 0
      %v603 = vsel %vm256, %v582, 0
      %v605 = vsel %vm256, %v585, 0
      %v607 = vsel %vm256, %v588, 0
      %v609 = vsel %vm256, %v591, 0
      %v611 = vsel %vm256, %v594, 0
      %v614 = vsel %vm281, %v596, 0
      %616 = vmatprep.subr.mxu0 0.0
      %617 = vmatpush1.msra.mxu0 0.0
      %618 = vmatprep.subr.mxu0 0.0
      %619 = vmatpush1.msra.mxu0 0.0
      %620 = vmatprep.subr.mxu0 0.0
      %621 = vmatpush1.msra.mxu0 0.0
      %622 = vmatprep.subr.mxu0 0.0
      %623 = vmatpush1.msra.mxu0 0.0
      %624 = vmatprep.subr.mxu0 0.0
      %625 = vmatpush1.msra.mxu0 0.0
      %626 = vmatprep.subr.mxu0 0.0
      %627 = vmatpush1.msra.mxu0 0.0
      %628 = vmatprep.subr.mxu0 0.0
      %629 = vmatpush1.msra.mxu0 0.0
      %630 = vmatprep.subr.mxu0 0.0
      %631 = vmatpush1.msra.mxu0 0.0
      %632 = vmatprep.subr.mxu0 0.0
      %633 = vmatpush1.msra.mxu0 0.0
      %634 = vmatprep.subr.mxu0 0.0
      %635 = vmatpush1.msra.mxu0 0.0
      %636 = vmatprep.subr.mxu0 0.0
      %637 = vmatpush1.msra.mxu0 0.0
      %638 = vmatprep.subr.mxu0 0.0
      %639 = vmatpush1.msra.mxu0 0.0
      %640 = vmatprep.subr.mxu0 0.0
      %641 = vmatpush1.msra.mxu0 0.0
      %642 = vmatprep.subr.mxu0 0.0
      %643 = vmatpush1.msra.mxu0 0.0
      %644 = vmatprep.subr.mxu0 0.0
      %645 = vmatpush1.msra.mxu0 0.0
      %646 = vmatprep.subr.mxu0 0.0
      %647 = vmatpush1.msra.mxu0 %v614
      %648 = vmatprep.subr.mxu0 0.0
      %649 = vmatpush2.msra.mxu0 0.0
      %650 = vmatprep.subr.mxu0 0.0
      %651 = vmatpush2.msra.mxu0 0.0
      %652 = vmatprep.subr.mxu0 0.0
      %653 = vmatpush2.msra.mxu0 0.0
      %654 = vmatprep.subr.mxu0 0.0
      %655 = vmatpush2.msra.mxu0 0.0
      %656 = vmatprep.subr.mxu0 0.0
      %657 = vmatpush2.msra.mxu0 0.0
      %658 = vmatprep.subr.mxu0 0.0
      %659 = vmatpush2.msra.mxu0 0.0
      %660 = vmatprep.subr.mxu0 0.0
      %661 = vmatpush2.msra.mxu0 0.0
      %662 = vmatprep.subr.mxu0 0.0
      %663 = vmatpush2.msra.mxu0 0.0
      %664 = vmatprep.subr.mxu0 0.0
      %665 = vmatpush2.msra.mxu0 0.0
      %666 = vmatprep.subr.mxu0 0.0
      %667 = vmatpush2.msra.mxu0 0.0
      %668 = vmatprep.subr.mxu0 0.0
      %669 = vmatpush2.msra.mxu0 0.0
      %670 = vmatprep.subr.mxu0 0.0
      %671 = vmatpush2.msra.mxu0 0.0
      %672 = vmatprep.subr.mxu0 0.0
      %673 = vmatpush2.msra.mxu0 0.0
      %674 = vmatprep.subr.mxu0 0.0
      %675 = vmatpush2.msra.mxu0 0.0
      %676 = vmatprep.subr.mxu0 0.0
      %677 = vmatpush2.msra.mxu0 0.0
      %678 = vmatprep.subr.mxu0 0.0
      %679 = vmatpush2.msra.mxu0 0.0
      %680 = vmatprep.mubr.f32.mxu0 0.0
      %681 = vmatmul.mubr.f32.gmra.mxu0 %v597
      %v682 = vpop.f32.mrf.mxu0
      %v683 = vadd.f32 0.0, %v682
      %v684 = vpop.f32.mrf.mxu0
      %685 = vmatprep.mubr.f32.mxu0 0.0
      %686 = vmatmul.mubr.f32.gmra.mxu0 %v599
      %v687 = vpop.f32.mrf.mxu0
      %v688 = vadd.f32 0.0, %v687
      %v689 = vpop.f32.mrf.mxu0
      %690 = vmatprep.mubr.f32.mxu0 0.0
      %691 = vmatmul.mubr.f32.gmra.mxu0 %v601
      %v692 = vpop.f32.mrf.mxu0
      %v693 = vadd.f32 0.0, %v692
      %v694 = vpop.f32.mrf.mxu0
      %695 = vmatprep.mubr.f32.mxu0 0.0
      %696 = vmatmul.mubr.f32.gmra.mxu0 %v603
      %v697 = vpop.f32.mrf.mxu0
      %v698 = vadd.f32 0.0, %v697
      %v699 = vpop.f32.mrf.mxu0
      %700 = vmatprep.mubr.f32.mxu0 0.0
      %701 = vmatmul.mubr.f32.gmra.mxu0 %v605
      %v702 = vpop.f32.mrf.mxu0
      %v703 = vadd.f32 0.0, %v702
      %v704 = vpop.f32.mrf.mxu0
      %705 = vmatprep.mubr.f32.mxu0 0.0
      %706 = vmatmul.mubr.f32.gmra.mxu0 %v607
      %v707 = vpop.f32.mrf.mxu0
      %v708 = vadd.f32 0.0, %v707
      %v709 = vpop.f32.mrf.mxu0
      %710 = vmatprep.mubr.f32.mxu0 0.0
      %711 = vmatmul.mubr.f32.gmra.mxu0 %v609
      %v712 = vpop.f32.mrf.mxu0
      %v713 = vadd.f32 0.0, %v712
      %v714 = vpop.f32.mrf.mxu0
      %715 = vmatprep.mubr.f32.mxu0 0.0
      %716 = vmatmul.mubr.f32.gmra.mxu0 %v611
      %v717 = vpop.f32.mrf.mxu0
      %v718 = vadd.f32 0.0, %v717
      %v719 = vpop.f32.mrf.mxu0
      %720 = vdwg.mxu0
      %v721 = vadd.f32 %v484, %v683
      %v722 = vadd.f32 %v489, %v688
      %v723 = vadd.f32 %v494, %v693
      %v724 = vadd.f32 %v499, %v698
      %v725 = vadd.f32 %v504, %v703
      %v726 = vadd.f32 %v509, %v708
      %v727 = vadd.f32 %v514, %v713
      %v728 = vadd.f32 %v519, %v718
      %s729 = scalar_lea.vmem %s207, 144
      %v730 = vld [vmem:[%s729] sm:$0xf]
      %v731 = vld [vmem:[%s729 + $0x8] sm:$0xf]
      %v732 = vld [vmem:[%s729 + $0x10] sm:$0xf]
      %v733 = vld [vmem:[%s729 + $0x18] sm:$0xf]
      %v734 = vld [vmem:[%s729 + $0x20] sm:$0xf]
      %v735 = vld [vmem:[%s729 + $0x28] sm:$0xf]
      %v736 = vld [vmem:[%s729 + $0x30] sm:$0xf]
      %v737 = vld [vmem:[%s729 + $0x38] sm:$0xf]
      %v738 = vunpack.c.l.bf16 %v730
      %v739 = vunpack.c.l.bf16 %v731
      %v740 = vunpack.c.l.bf16 %v732
      %v741 = vunpack.c.l.bf16 %v733
      %v742 = vunpack.c.l.bf16 %v734
      %v743 = vunpack.c.l.bf16 %v735
      %v744 = vunpack.c.l.bf16 %v736
      %v745 = vunpack.c.l.bf16 %v737
      %s746 = scalar_lea.vmem %s1, 12
      %v747 = vld [vmem:[%s746] sm:$0xf]
      %v749 = vsel %vm256, %v738, 0
      %v752 = vsel %vm256, %v739, 0
      %v755 = vsel %vm256, %v740, 0
      %v758 = vsel %vm256, %v741, 0
      %v761 = vsel %vm256, %v742, 0
      %v764 = vsel %vm256, %v743, 0
      %v767 = vsel %vm256, %v744, 0
      %v770 = vsel %vm256, %v745, 0
      %v773 = vsel %vm281, %v747, 0
      %775 = vmatprep.subr.mxu0 0.0
      %776 = vmatpush1.msra.mxu0 0.0
      %777 = vmatprep.subr.mxu0 0.0
      %778 = vmatpush1.msra.mxu0 0.0
      %779 = vmatprep.subr.mxu0 0.0
      %780 = vmatpush1.msra.mxu0 0.0
      %781 = vmatprep.subr.mxu0 0.0
      %782 = vmatpush1.msra.mxu0 0.0
      %783 = vmatprep.subr.mxu0 0.0
      %784 = vmatpush1.msra.mxu0 0.0
      %785 = vmatprep.subr.mxu0 0.0
      %786 = vmatpush1.msra.mxu0 0.0
      %787 = vmatprep.subr.mxu0 0.0
      %788 = vmatpush1.msra.mxu0 0.0
      %789 = vmatprep.subr.mxu0 0.0
      %790 = vmatpush1.msra.mxu0 0.0
      %791 = vmatprep.subr.mxu0 0.0
      %792 = vmatpush1.msra.mxu0 0.0
      %793 = vmatprep.subr.mxu0 0.0
      %794 = vmatpush1.msra.mxu0 0.0
      %795 = vmatprep.subr.mxu0 0.0
      %796 = vmatpush1.msra.mxu0 0.0
      %797 = vmatprep.subr.mxu0 0.0
      %798 = vmatpush1.msra.mxu0 0.0
      %799 = vmatprep.subr.mxu0 0.0
      %800 = vmatpush1.msra.mxu0 0.0
      %801 = vmatprep.subr.mxu0 0.0
      %802 = vmatpush1.msra.mxu0 0.0
      %803 = vmatprep.subr.mxu0 0.0
      %804 = vmatpush1.msra.mxu0 0.0
      %805 = vmatprep.subr.mxu0 0.0
      %806 = vmatpush1.msra.mxu0 %v773
      %807 = vmatprep.subr.mxu0 0.0
      %808 = vmatpush2.msra.mxu0 0.0
      %809 = vmatprep.subr.mxu0 0.0
      %810 = vmatpush2.msra.mxu0 0.0
      %811 = vmatprep.subr.mxu0 0.0
      %812 = vmatpush2.msra.mxu0 0.0
      %813 = vmatprep.subr.mxu0 0.0
      %814 = vmatpush2.msra.mxu0 0.0
      %815 = vmatprep.subr.mxu0 0.0
      %816 = vmatpush2.msra.mxu0 0.0
      %817 = vmatprep.subr.mxu0 0.0
      %818 = vmatpush2.msra.mxu0 0.0
      %819 = vmatprep.subr.mxu0 0.0
      %820 = vmatpush2.msra.mxu0 0.0
      %821 = vmatprep.subr.mxu0 0.0
      %822 = vmatpush2.msra.mxu0 0.0
      %823 = vmatprep.subr.mxu0 0.0
      %824 = vmatpush2.msra.mxu0 0.0
      %825 = vmatprep.subr.mxu0 0.0
      %826 = vmatpush2.msra.mxu0 0.0
      %827 = vmatprep.subr.mxu0 0.0
      %828 = vmatpush2.msra.mxu0 0.0
      %829 = vmatprep.subr.mxu0 0.0
      %830 = vmatpush2.msra.mxu0 0.0
      %831 = vmatprep.subr.mxu0 0.0
      %832 = vmatpush2.msra.mxu0 0.0
      %833 = vmatprep.subr.mxu0 0.0
      %834 = vmatpush2.msra.mxu0 0.0
      %835 = vmatprep.subr.mxu0 0.0
      %836 = vmatpush2.msra.mxu0 0.0
      %837 = vmatprep.subr.mxu0 0.0
      %838 = vmatpush2.msra.mxu0 0.0
      %839 = vmatprep.mubr.f32.mxu0 0.0
      %840 = vmatmul.mubr.f32.gmra.mxu0 %v749
      %v841 = vpop.f32.mrf.mxu0
      %v842 = vadd.f32 0.0, %v841
      %v843 = vpop.f32.mrf.mxu0
      %844 = vmatprep.mubr.f32.mxu0 0.0
      %845 = vmatmul.mubr.f32.gmra.mxu0 %v752
      %v846 = vpop.f32.mrf.mxu0
      %v847 = vadd.f32 0.0, %v846
      %v848 = vpop.f32.mrf.mxu0
      %849 = vmatprep.mubr.f32.mxu0 0.0
      %850 = vmatmul.mubr.f32.gmra.mxu0 %v755
      %v851 = vpop.f32.mrf.mxu0
      %v852 = vadd.f32 0.0, %v851
      %v853 = vpop.f32.mrf.mxu0
      %854 = vmatprep.mubr.f32.mxu0 0.0
      %855 = vmatmul.mubr.f32.gmra.mxu0 %v758
      %v856 = vpop.f32.mrf.mxu0
      %v857 = vadd.f32 0.0, %v856
      %v858 = vpop.f32.mrf.mxu0
      %859 = vmatprep.mubr.f32.mxu0 0.0
      %860 = vmatmul.mubr.f32.gmra.mxu0 %v761
      %v861 = vpop.f32.mrf.mxu0
      %v862 = vadd.f32 0.0, %v861
      %v863 = vpop.f32.mrf.mxu0
      %864 = vmatprep.mubr.f32.mxu0 0.0
      %865 = vmatmul.mubr.f32.gmra.mxu0 %v764
      %v866 = vpop.f32.mrf.mxu0
      %v867 = vadd.f32 0.0, %v866
      %v868 = vpop.f32.mrf.mxu0
      %869 = vmatprep.mubr.f32.mxu0 0.0
      %870 = vmatmul.mubr.f32.gmra.mxu0 %v767
      %v871 = vpop.f32.mrf.mxu0
      %v872 = vadd.f32 0.0, %v871
      %v873 = vpop.f32.mrf.mxu0
      %874 = vmatprep.mubr.f32.mxu0 0.0
      %875 = vmatmul.mubr.f32.gmra.mxu0 %v770
      %v876 = vpop.f32.mrf.mxu0
      %v877 = vadd.f32 0.0, %v876
      %v878 = vpop.f32.mrf.mxu0
      %879 = vdwg.mxu0
      %v880 = vadd.f32 %v721, %v842
      %v881 = vadd.f32 %v722, %v847
      %v882 = vadd.f32 %v723, %v852
      %v883 = vadd.f32 %v724, %v857
      %v884 = vadd.f32 %v725, %v862
      %v885 = vadd.f32 %v726, %v867
      %v886 = vadd.f32 %v727, %v872
      %v887 = vadd.f32 %v728, %v877
      %s888 = scalar_lea.vmem %s207, 216
      %v889 = vld [vmem:[%s888] sm:$0xf]
      %v890 = vld [vmem:[%s888 + $0x8] sm:$0xf]
      %v891 = vld [vmem:[%s888 + $0x10] sm:$0xf]
      %v892 = vld [vmem:[%s888 + $0x18] sm:$0xf]
      %v893 = vld [vmem:[%s888 + $0x20] sm:$0xf]
      %v894 = vld [vmem:[%s888 + $0x28] sm:$0xf]
      %v895 = vld [vmem:[%s888 + $0x30] sm:$0xf]
      %v896 = vld [vmem:[%s888 + $0x38] sm:$0xf]
      %v897 = vunpack.c.l.bf16 %v889
      %v898 = vunpack.c.l.bf16 %v890
      %v899 = vunpack.c.l.bf16 %v891
      %v900 = vunpack.c.l.bf16 %v892
      %v901 = vunpack.c.l.bf16 %v893
      %v902 = vunpack.c.l.bf16 %v894
      %v903 = vunpack.c.l.bf16 %v895
      %v904 = vunpack.c.l.bf16 %v896
      %s905 = scalar_lea.vmem %s1, 16
      %v906 = vld [vmem:[%s905] sm:$0xf]
      %v908 = vsel %vm256, %v897, 0
      %v911 = vsel %vm256, %v898, 0
      %v914 = vsel %vm256, %v899, 0
      %v917 = vsel %vm256, %v900, 0
      %v920 = vsel %vm256, %v901, 0
      %v923 = vsel %vm256, %v902, 0
      %v926 = vsel %vm256, %v903, 0
      %v929 = vsel %vm256, %v904, 0
      %v932 = vsel %vm281, %v906, 0
      %934 = vmatprep.subr.mxu0 0.0
      %935 = vmatpush1.msra.mxu0 0.0
      %936 = vmatprep.subr.mxu0 0.0
      %937 = vmatpush1.msra.mxu0 0.0
      %938 = vmatprep.subr.mxu0 0.0
      %939 = vmatpush1.msra.mxu0 0.0
      %940 = vmatprep.subr.mxu0 0.0
      %941 = vmatpush1.msra.mxu0 0.0
      %942 = vmatprep.subr.mxu0 0.0
      %943 = vmatpush1.msra.mxu0 0.0
      %944 = vmatprep.subr.mxu0 0.0
      %945 = vmatpush1.msra.mxu0 0.0
      %946 = vmatprep.subr.mxu0 0.0
      %947 = vmatpush1.msra.mxu0 0.0
      %948 = vmatprep.subr.mxu0 0.0
      %949 = vmatpush1.msra.mxu0 0.0
      %950 = vmatprep.subr.mxu0 0.0
      %951 = vmatpush1.msra.mxu0 0.0
      %952 = vmatprep.subr.mxu0 0.0
      %953 = vmatpush1.msra.mxu0 0.0
      %954 = vmatprep.subr.mxu0 0.0
      %955 = vmatpush1.msra.mxu0 0.0
      %956 = vmatprep.subr.mxu0 0.0
      %957 = vmatpush1.msra.mxu0 0.0
      %958 = vmatprep.subr.mxu0 0.0
      %959 = vmatpush1.msra.mxu0 0.0
      %960 = vmatprep.subr.mxu0 0.0
      %961 = vmatpush1.msra.mxu0 0.0
      %962 = vmatprep.subr.mxu0 0.0
      %963 = vmatpush1.msra.mxu0 0.0
      %964 = vmatprep.subr.mxu0 0.0
      %965 = vmatpush1.msra.mxu0 %v932
      %966 = vmatprep.subr.mxu0 0.0
      %967 = vmatpush2.msra.mxu0 0.0
      %968 = vmatprep.subr.mxu0 0.0
      %969 = vmatpush2.msra.mxu0 0.0
      %970 = vmatprep.subr.mxu0 0.0
      %971 = vmatpush2.msra.mxu0 0.0
      %972 = vmatprep.subr.mxu0 0.0
      %973 = vmatpush2.msra.mxu0 0.0
      %974 = vmatprep.subr.mxu0 0.0
      %975 = vmatpush2.msra.mxu0 0.0
      %976 = vmatprep.subr.mxu0 0.0
      %977 = vmatpush2.msra.mxu0 0.0
      %978 = vmatprep.subr.mxu0 0.0
      %979 = vmatpush2.msra.mxu0 0.0
      %980 = vmatprep.subr.mxu0 0.0
      %981 = vmatpush2.msra.mxu0 0.0
      %982 = vmatprep.subr.mxu0 0.0
      %983 = vmatpush2.msra.mxu0 0.0
      %984 = vmatprep.subr.mxu0 0.0
      %985 = vmatpush2.msra.mxu0 0.0
      %986 = vmatprep.subr.mxu0 0.0
      %987 = vmatpush2.msra.mxu0 0.0
      %988 = vmatprep.subr.mxu0 0.0
      %989 = vmatpush2.msra.mxu0 0.0
      %990 = vmatprep.subr.mxu0 0.0
      %991 = vmatpush2.msra.mxu0 0.0
      %992 = vmatprep.subr.mxu0 0.0
      %993 = vmatpush2.msra.mxu0 0.0
      %994 = vmatprep.subr.mxu0 0.0
      %995 = vmatpush2.msra.mxu0 0.0
      %996 = vmatprep.subr.mxu0 0.0
      %997 = vmatpush2.msra.mxu0 0.0
      %998 = vmatprep.mubr.f32.mxu0 0.0
      %999 = vmatmul.mubr.f32.gmra.mxu0 %v908
      %v1000 = vpop.f32.mrf.mxu0
      %v1001 = vadd.f32 0.0, %v1000
      %v1002 = vpop.f32.mrf.mxu0
      %1003 = vmatprep.mubr.f32.mxu0 0.0
      %1004 = vmatmul.mubr.f32.gmra.mxu0 %v911
      %v1005 = vpop.f32.mrf.mxu0
      %v1006 = vadd.f32 0.0, %v1005
      %v1007 = vpop.f32.mrf.mxu0
      %1008 = vmatprep.mubr.f32.mxu0 0.0
      %1009 = vmatmul.mubr.f32.gmra.mxu0 %v914
      %v1010 = vpop.f32.mrf.mxu0
      %v1011 = vadd.f32 0.0, %v1010
      %v1012 = vpop.f32.mrf.mxu0
      %1013 = vmatprep.mubr.f32.mxu0 0.0
      %1014 = vmatmul.mubr.f32.gmra.mxu0 %v917
      %v1015 = vpop.f32.mrf.mxu0
      %v1016 = vadd.f32 0.0, %v1015
      %v1017 = vpop.f32.mrf.mxu0
      %1018 = vmatprep.mubr.f32.mxu0 0.0
      %1019 = vmatmul.mubr.f32.gmra.mxu0 %v920
      %v1020 = vpop.f32.mrf.mxu0
      %v1021 = vadd.f32 0.0, %v1020
      %v1022 = vpop.f32.mrf.mxu0
      %1023 = vmatprep.mubr.f32.mxu0 0.0
      %1024 = vmatmul.mubr.f32.gmra.mxu0 %v923
      %v1025 = vpop.f32.mrf.mxu0
      %v1026 = vadd.f32 0.0, %v1025
      %v1027 = vpop.f32.mrf.mxu0
      %1028 = vmatprep.mubr.f32.mxu0 0.0
      %1029 = vmatmul.mubr.f32.gmra.mxu0 %v926
      %v1030 = vpop.f32.mrf.mxu0
      %v1031 = vadd.f32 0.0, %v1030
      %v1032 = vpop.f32.mrf.mxu0
      %1033 = vmatprep.mubr.f32.mxu0 0.0
      %1034 = vmatmul.mubr.f32.gmra.mxu0 %v929
      %v1035 = vpop.f32.mrf.mxu0
      %v1036 = vadd.f32 0.0, %v1035
      %v1037 = vpop.f32.mrf.mxu0
      %1038 = vdwg.mxu0
      %v1039 = vadd.f32 %v880, %v1001
      %v1040 = vadd.f32 %v881, %v1006
      %v1041 = vadd.f32 %v882, %v1011
      %v1042 = vadd.f32 %v883, %v1016
      %v1043 = vadd.f32 %v884, %v1021
      %v1044 = vadd.f32 %v885, %v1026
      %v1045 = vadd.f32 %v886, %v1031
      %v1046 = vadd.f32 %v887, %v1036
      %v1047 = vld [vmem:[%s729] sm:$0xf]
      %v1048 = vld [vmem:[%s729 + $0x4] sm:$0x1]
      %v1049 = vld [vmem:[%s729 + $0x8] sm:$0xf]
      %v1050 = vld [vmem:[%s729 + $0xc] sm:$0x1]
      %v1051 = vld [vmem:[%s729 + $0x10] sm:$0xf]
      %v1052 = vld [vmem:[%s729 + $0x14] sm:$0x1]
      %v1053 = vld [vmem:[%s729 + $0x18] sm:$0xf]
      %v1054 = vld [vmem:[%s729 + $0x1c] sm:$0x1]
      %v1055 = vld [vmem:[%s729 + $0x20] sm:$0xf]
      %v1056 = vld [vmem:[%s729 + $0x24] sm:$0x1]
      %v1057 = vld [vmem:[%s729 + $0x28] sm:$0xf]
      %v1058 = vld [vmem:[%s729 + $0x2c] sm:$0x1]
      %v1059 = vld [vmem:[%s729 + $0x30] sm:$0xf]
      %v1060 = vld [vmem:[%s729 + $0x34] sm:$0x1]
      %v1061 = vld [vmem:[%s729 + $0x38] sm:$0xf]
      %v1062 = vld [vmem:[%s729 + $0x3c] sm:$0x1]
      %v1063 = vunpack.c.l.bf16 %v1047
      %v1064 = vunpack.c.l.bf16 %v1048
      %v1065 = vunpack.c.l.bf16 %v1049
      %v1066 = vunpack.c.l.bf16 %v1050
      %v1067 = vunpack.c.l.bf16 %v1051
      %v1068 = vunpack.c.l.bf16 %v1052
      %v1069 = vunpack.c.l.bf16 %v1053
      %v1070 = vunpack.c.l.bf16 %v1054
      %v1071 = vunpack.c.l.bf16 %v1055
      %v1072 = vunpack.c.l.bf16 %v1056
      %v1073 = vunpack.c.l.bf16 %v1057
      %v1074 = vunpack.c.l.bf16 %v1058
      %v1075 = vunpack.c.l.bf16 %v1059
      %v1076 = vunpack.c.l.bf16 %v1060
      %v1077 = vunpack.c.l.bf16 %v1061
      %v1078 = vunpack.c.l.bf16 %v1062
      %v1095 = vrot.slane %v1063, 1
      %v1096 = vrot.slane %v1064, 1
      %v1097 = vsel %vm570, %v1095, %v1096
      %v1098 = vrot.slane %v1065, 1
      %v1099 = vrot.slane %v1066, 1
      %v1100 = vsel %vm570, %v1098, %v1099
      %v1101 = vrot.slane %v1067, 1
      %v1102 = vrot.slane %v1068, 1
      %v1103 = vsel %vm570, %v1101, %v1102
      %v1104 = vrot.slane %v1069, 1
      %v1105 = vrot.slane %v1070, 1
      %v1106 = vsel %vm570, %v1104, %v1105
      %v1107 = vrot.slane %v1071, 1
      %v1108 = vrot.slane %v1072, 1
      %v1109 = vsel %vm570, %v1107, %v1108
      %v1110 = vrot.slane %v1073, 1
      %v1111 = vrot.slane %v1074, 1
      %v1112 = vsel %vm570, %v1110, %v1111
      %v1113 = vrot.slane %v1075, 1
      %v1114 = vrot.slane %v1076, 1
      %v1115 = vsel %vm570, %v1113, %v1114
      %v1116 = vrot.slane %v1077, 1
      %v1117 = vrot.slane %v1078, 1
      %v1118 = vsel %vm570, %v1116, %v1117
      %s1119 = scalar_lea.vmem %s1, 20
      %v1120 = vld [vmem:[%s1119] sm:$0xf]
      %v1121 = vsel %vm256, %v1097, 0
      %v1123 = vsel %vm256, %v1100, 0
      %v1125 = vsel %vm256, %v1103, 0
      %v1127 = vsel %vm256, %v1106, 0
      %v1129 = vsel %vm256, %v1109, 0
      %v1131 = vsel %vm256, %v1112, 0
      %v1133 = vsel %vm256, %v1115, 0
      %v1135 = vsel %vm256, %v1118, 0
      %v1138 = vsel %vm281, %v1120, 0
      %1140 = vmatprep.subr.mxu0 0.0
      %1141 = vmatpush1.msra.mxu0 0.0
      %1142 = vmatprep.subr.mxu0 0.0
      %1143 = vmatpush1.msra.mxu0 0.0
      %1144 = vmatprep.subr.mxu0 0.0
      %1145 = vmatpush1.msra.mxu0 0.0
      %1146 = vmatprep.subr.mxu0 0.0
      %1147 = vmatpush1.msra.mxu0 0.0
      %1148 = vmatprep.subr.mxu0 0.0
      %1149 = vmatpush1.msra.mxu0 0.0
      %1150 = vmatprep.subr.mxu0 0.0
      %1151 = vmatpush1.msra.mxu0 0.0
      %1152 = vmatprep.subr.mxu0 0.0
      %1153 = vmatpush1.msra.mxu0 0.0
      %1154 = vmatprep.subr.mxu0 0.0
      %1155 = vmatpush1.msra.mxu0 0.0
      %1156 = vmatprep.subr.mxu0 0.0
      %1157 = vmatpush1.msra.mxu0 0.0
      %1158 = vmatprep.subr.mxu0 0.0
      %1159 = vmatpush1.msra.mxu0 0.0
      %1160 = vmatprep.subr.mxu0 0.0
      %1161 = vmatpush1.msra.mxu0 0.0
      %1162 = vmatprep.subr.mxu0 0.0
      %1163 = vmatpush1.msra.mxu0 0.0
      %1164 = vmatprep.subr.mxu0 0.0
      %1165 = vmatpush1.msra.mxu0 0.0
      %1166 = vmatprep.subr.mxu0 0.0
      %1167 = vmatpush1.msra.mxu0 0.0
      %1168 = vmatprep.subr.mxu0 0.0
      %1169 = vmatpush1.msra.mxu0 0.0
      %1170 = vmatprep.subr.mxu0 0.0
      %1171 = vmatpush1.msra.mxu0 %v1138
      %1172 = vmatprep.subr.mxu0 0.0
      %1173 = vmatpush2.msra.mxu0 0.0
      %1174 = vmatprep.subr.mxu0 0.0
      %1175 = vmatpush2.msra.mxu0 0.0
      %1176 = vmatprep.subr.mxu0 0.0
      %1177 = vmatpush2.msra.mxu0 0.0
      %1178 = vmatprep.subr.mxu0 0.0
      %1179 = vmatpush2.msra.mxu0 0.0
      %1180 = vmatprep.subr.mxu0 0.0
      %1181 = vmatpush2.msra.mxu0 0.0
      %1182 = vmatprep.subr.mxu0 0.0
      %1183 = vmatpush2.msra.mxu0 0.0
      %1184 = vmatprep.subr.mxu0 0.0
      %1185 = vmatpush2.msra.mxu0 0.0
      %1186 = vmatprep.subr.mxu0 0.0
      %1187 = vmatpush2.msra.mxu0 0.0
      %1188 = vmatprep.subr.mxu0 0.0
      %1189 = vmatpush2.msra.mxu0 0.0
      %1190 = vmatprep.subr.mxu0 0.0
      %1191 = vmatpush2.msra.mxu0 0.0
      %1192 = vmatprep.subr.mxu0 0.0
      %1193 = vmatpush2.msra.mxu0 0.0
      %1194 = vmatprep.subr.mxu0 0.0
      %1195 = vmatpush2.msra.mxu0 0.0
      %1196 = vmatprep.subr.mxu0 0.0
      %1197 = vmatpush2.msra.mxu0 0.0
      %1198 = vmatprep.subr.mxu0 0.0
      %1199 = vmatpush2.msra.mxu0 0.0
      %1200 = vmatprep.subr.mxu0 0.0
      %1201 = vmatpush2.msra.mxu0 0.0
      %1202 = vmatprep.subr.mxu0 0.0
      %1203 = vmatpush2.msra.mxu0 0.0
      %1204 = vmatprep.mubr.f32.mxu0 0.0
      %1205 = vmatmul.mubr.f32.gmra.mxu0 %v1121
      %v1206 = vpop.f32.mrf.mxu0
      %v1207 = vadd.f32 0.0, %v1206
      %v1208 = vpop.f32.mrf.mxu0
      %1209 = vmatprep.mubr.f32.mxu0 0.0
      %1210 = vmatmul.mubr.f32.gmra.mxu0 %v1123
      %v1211 = vpop.f32.mrf.mxu0
      %v1212 = vadd.f32 0.0, %v1211
      %v1213 = vpop.f32.mrf.mxu0
      %1214 = vmatprep.mubr.f32.mxu0 0.0
      %1215 = vmatmul.mubr.f32.gmra.mxu0 %v1125
      %v1216 = vpop.f32.mrf.mxu0
      %v1217 = vadd.f32 0.0, %v1216
      %v1218 = vpop.f32.mrf.mxu0
      %1219 = vmatprep.mubr.f32.mxu0 0.0
      %1220 = vmatmul.mubr.f32.gmra.mxu0 %v1127
      %v1221 = vpop.f32.mrf.mxu0
      %v1222 = vadd.f32 0.0, %v1221
      %v1223 = vpop.f32.mrf.mxu0
      %1224 = vmatprep.mubr.f32.mxu0 0.0
      %1225 = vmatmul.mubr.f32.gmra.mxu0 %v1129
      %v1226 = vpop.f32.mrf.mxu0
      %v1227 = vadd.f32 0.0, %v1226
      %v1228 = vpop.f32.mrf.mxu0
      %1229 = vmatprep.mubr.f32.mxu0 0.0
      %1230 = vmatmul.mubr.f32.gmra.mxu0 %v1131
      %v1231 = vpop.f32.mrf.mxu0
      %v1232 = vadd.f32 0.0, %v1231
      %v1233 = vpop.f32.mrf.mxu0
      %1234 = vmatprep.mubr.f32.mxu0 0.0
      %1235 = vmatmul.mubr.f32.gmra.mxu0 %v1133
      %v1236 = vpop.f32.mrf.mxu0
      %v1237 = vadd.f32 0.0, %v1236
      %v1238 = vpop.f32.mrf.mxu0
      %1239 = vmatprep.mubr.f32.mxu0 0.0
      %1240 = vmatmul.mubr.f32.gmra.mxu0 %v1135
      %v1241 = vpop.f32.mrf.mxu0
      %v1242 = vadd.f32 0.0, %v1241
      %v1243 = vpop.f32.mrf.mxu0
      %1244 = vdwg.mxu0
      %v1245 = vadd.f32 %v1039, %v1207
      %v1246 = vadd.f32 %v1040, %v1212
      %v1247 = vadd.f32 %v1041, %v1217
      %v1248 = vadd.f32 %v1042, %v1222
      %v1249 = vadd.f32 %v1043, %v1227
      %v1250 = vadd.f32 %v1044, %v1232
      %v1251 = vadd.f32 %v1045, %v1237
      %v1252 = vadd.f32 %v1046, %v1242
      %s1253 = scalar_lea.vmem %s207, 8
      %v1254 = vld [vmem:[%s1253] sm:$0xf]
      %v1255 = vld [vmem:[%s1253 + $0x8] sm:$0xf]
      %v1256 = vld [vmem:[%s1253 + $0x10] sm:$0xf]
      %v1257 = vld [vmem:[%s1253 + $0x18] sm:$0xf]
      %v1258 = vld [vmem:[%s1253 + $0x20] sm:$0xf]
      %v1259 = vld [vmem:[%s1253 + $0x28] sm:$0xf]
      %v1260 = vld [vmem:[%s1253 + $0x30] sm:$0xf]
      %v1261 = vld [vmem:[%s1253 + $0x38] sm:$0xf]
      %v1262 = vunpack.c.l.bf16 %v1254
      %v1263 = vunpack.c.l.bf16 %v1255
      %v1264 = vunpack.c.l.bf16 %v1256
      %v1265 = vunpack.c.l.bf16 %v1257
      %v1266 = vunpack.c.l.bf16 %v1258
      %v1267 = vunpack.c.l.bf16 %v1259
      %v1268 = vunpack.c.l.bf16 %v1260
      %v1269 = vunpack.c.l.bf16 %v1261
      %s1270 = scalar_lea.vmem %s1, 24
      %v1271 = vld [vmem:[%s1270] sm:$0xf]
      %v1273 = vsel %vm256, %v1262, 0
      %v1276 = vsel %vm256, %v1263, 0
      %v1279 = vsel %vm256, %v1264, 0
      %v1282 = vsel %vm256, %v1265, 0
      %v1285 = vsel %vm256, %v1266, 0
      %v1288 = vsel %vm256, %v1267, 0
      %v1291 = vsel %vm256, %v1268, 0
      %v1294 = vsel %vm256, %v1269, 0
      %v1297 = vsel %vm281, %v1271, 0
      %1299 = vmatprep.subr.mxu0 0.0
      %1300 = vmatpush1.msra.mxu0 0.0
      %1301 = vmatprep.subr.mxu0 0.0
      %1302 = vmatpush1.msra.mxu0 0.0
      %1303 = vmatprep.subr.mxu0 0.0
      %1304 = vmatpush1.msra.mxu0 0.0
      %1305 = vmatprep.subr.mxu0 0.0
      %1306 = vmatpush1.msra.mxu0 0.0
      %1307 = vmatprep.subr.mxu0 0.0
      %1308 = vmatpush1.msra.mxu0 0.0
      %1309 = vmatprep.subr.mxu0 0.0
      %1310 = vmatpush1.msra.mxu0 0.0
      %1311 = vmatprep.subr.mxu0 0.0
      %1312 = vmatpush1.msra.mxu0 0.0
      %1313 = vmatprep.subr.mxu0 0.0
      %1314 = vmatpush1.msra.mxu0 0.0
      %1315 = vmatprep.subr.mxu0 0.0
      %1316 = vmatpush1.msra.mxu0 0.0
      %1317 = vmatprep.subr.mxu0 0.0
      %1318 = vmatpush1.msra.mxu0 0.0
      %1319 = vmatprep.subr.mxu0 0.0
      %1320 = vmatpush1.msra.mxu0 0.0
      %1321 = vmatprep.subr.mxu0 0.0
      %1322 = vmatpush1.msra.mxu0 0.0
      %1323 = vmatprep.subr.mxu0 0.0
      %1324 = vmatpush1.msra.mxu0 0.0
      %1325 = vmatprep.subr.mxu0 0.0
      %1326 = vmatpush1.msra.mxu0 0.0
      %1327 = vmatprep.subr.mxu0 0.0
      %1328 = vmatpush1.msra.mxu0 0.0
      %1329 = vmatprep.subr.mxu0 0.0
      %1330 = vmatpush1.msra.mxu0 %v1297
      %1331 = vmatprep.subr.mxu0 0.0
      %1332 = vmatpush2.msra.mxu0 0.0
      %1333 = vmatprep.subr.mxu0 0.0
      %1334 = vmatpush2.msra.mxu0 0.0
      %1335 = vmatprep.subr.mxu0 0.0
      %1336 = vmatpush2.msra.mxu0 0.0
      %1337 = vmatprep.subr.mxu0 0.0
      %1338 = vmatpush2.msra.mxu0 0.0
      %1339 = vmatprep.subr.mxu0 0.0
      %1340 = vmatpush2.msra.mxu0 0.0
      %1341 = vmatprep.subr.mxu0 0.0
      %1342 = vmatpush2.msra.mxu0 0.0
      %1343 = vmatprep.subr.mxu0 0.0
      %1344 = vmatpush2.msra.mxu0 0.0
      %1345 = vmatprep.subr.mxu0 0.0
      %1346 = vmatpush2.msra.mxu0 0.0
      %1347 = vmatprep.subr.mxu0 0.0
      %1348 = vmatpush2.msra.mxu0 0.0
      %1349 = vmatprep.subr.mxu0 0.0
      %1350 = vmatpush2.msra.mxu0 0.0
      %1351 = vmatprep.subr.mxu0 0.0
      %1352 = vmatpush2.msra.mxu0 0.0
      %1353 = vmatprep.subr.mxu0 0.0
      %1354 = vmatpush2.msra.mxu0 0.0
      %1355 = vmatprep.subr.mxu0 0.0
      %1356 = vmatpush2.msra.mxu0 0.0
      %1357 = vmatprep.subr.mxu0 0.0
      %1358 = vmatpush2.msra.mxu0 0.0
      %1359 = vmatprep.subr.mxu0 0.0
      %1360 = vmatpush2.msra.mxu0 0.0
      %1361 = vmatprep.subr.mxu0 0.0
      %1362 = vmatpush2.msra.mxu0 0.0
      %1363 = vmatprep.mubr.f32.mxu0 0.0
      %1364 = vmatmul.mubr.f32.gmra.mxu0 %v1273
      %v1365 = vpop.f32.mrf.mxu0
      %v1366 = vadd.f32 0.0, %v1365
      %v1367 = vpop.f32.mrf.mxu0
      %1368 = vmatprep.mubr.f32.mxu0 0.0
      %1369 = vmatmul.mubr.f32.gmra.mxu0 %v1276
      %v1370 = vpop.f32.mrf.mxu0
      %v1371 = vadd.f32 0.0, %v1370
      %v1372 = vpop.f32.mrf.mxu0
      %1373 = vmatprep.mubr.f32.mxu0 0.0
      %1374 = vmatmul.mubr.f32.gmra.mxu0 %v1279
      %v1375 = vpop.f32.mrf.mxu0
      %v1376 = vadd.f32 0.0, %v1375
      %v1377 = vpop.f32.mrf.mxu0
      %1378 = vmatprep.mubr.f32.mxu0 0.0
      %1379 = vmatmul.mubr.f32.gmra.mxu0 %v1282
      %v1380 = vpop.f32.mrf.mxu0
      %v1381 = vadd.f32 0.0, %v1380
      %v1382 = vpop.f32.mrf.mxu0
      %1383 = vmatprep.mubr.f32.mxu0 0.0
      %1384 = vmatmul.mubr.f32.gmra.mxu0 %v1285
      %v1385 = vpop.f32.mrf.mxu0
      %v1386 = vadd.f32 0.0, %v1385
      %v1387 = vpop.f32.mrf.mxu0
      %1388 = vmatprep.mubr.f32.mxu0 0.0
      %1389 = vmatmul.mubr.f32.gmra.mxu0 %v1288
      %v1390 = vpop.f32.mrf.mxu0
      %v1391 = vadd.f32 0.0, %v1390
      %v1392 = vpop.f32.mrf.mxu0
      %1393 = vmatprep.mubr.f32.mxu0 0.0
      %1394 = vmatmul.mubr.f32.gmra.mxu0 %v1291
      %v1395 = vpop.f32.mrf.mxu0
      %v1396 = vadd.f32 0.0, %v1395
      %v1397 = vpop.f32.mrf.mxu0
      %1398 = vmatprep.mubr.f32.mxu0 0.0
      %1399 = vmatmul.mubr.f32.gmra.mxu0 %v1294
      %v1400 = vpop.f32.mrf.mxu0
      %v1401 = vadd.f32 0.0, %v1400
      %v1402 = vpop.f32.mrf.mxu0
      %1403 = vdwg.mxu0
      %v1404 = vadd.f32 %v1245, %v1366
      %v1405 = vadd.f32 %v1246, %v1371
      %v1406 = vadd.f32 %v1247, %v1376
      %v1407 = vadd.f32 %v1248, %v1381
      %v1408 = vadd.f32 %v1249, %v1386
      %v1409 = vadd.f32 %v1250, %v1391
      %v1410 = vadd.f32 %v1251, %v1396
      %v1411 = vadd.f32 %v1252, %v1401
      %s1412 = scalar_lea.vmem %s207, 80
      %v1413 = vld [vmem:[%s1412] sm:$0xf]
      %v1414 = vld [vmem:[%s1412 + $0x8] sm:$0xf]
      %v1415 = vld [vmem:[%s1412 + $0x10] sm:$0xf]
      %v1416 = vld [vmem:[%s1412 + $0x18] sm:$0xf]
      %v1417 = vld [vmem:[%s1412 + $0x20] sm:$0xf]
      %v1418 = vld [vmem:[%s1412 + $0x28] sm:$0xf]
      %v1419 = vld [vmem:[%s1412 + $0x30] sm:$0xf]
      %v1420 = vld [vmem:[%s1412 + $0x38] sm:$0xf]
      %v1421 = vunpack.c.l.bf16 %v1413
      %v1422 = vunpack.c.l.bf16 %v1414
      %v1423 = vunpack.c.l.bf16 %v1415
      %v1424 = vunpack.c.l.bf16 %v1416
      %v1425 = vunpack.c.l.bf16 %v1417
      %v1426 = vunpack.c.l.bf16 %v1418
      %v1427 = vunpack.c.l.bf16 %v1419
      %v1428 = vunpack.c.l.bf16 %v1420
      %s1429 = scalar_lea.vmem %s1, 28
      %v1430 = vld [vmem:[%s1429] sm:$0xf]
      %v1432 = vsel %vm256, %v1421, 0
      %v1435 = vsel %vm256, %v1422, 0
      %v1438 = vsel %vm256, %v1423, 0
      %v1441 = vsel %vm256, %v1424, 0
      %v1444 = vsel %vm256, %v1425, 0
      %v1447 = vsel %vm256, %v1426, 0
      %v1450 = vsel %vm256, %v1427, 0
      %v1453 = vsel %vm256, %v1428, 0
      %v1456 = vsel %vm281, %v1430, 0
      %1458 = vmatprep.subr.mxu0 0.0
      %1459 = vmatpush1.msra.mxu0 0.0
      %1460 = vmatprep.subr.mxu0 0.0
      %1461 = vmatpush1.msra.mxu0 0.0
      %1462 = vmatprep.subr.mxu0 0.0
      %1463 = vmatpush1.msra.mxu0 0.0
      %1464 = vmatprep.subr.mxu0 0.0
      %1465 = vmatpush1.msra.mxu0 0.0
      %1466 = vmatprep.subr.mxu0 0.0
      %1467 = vmatpush1.msra.mxu0 0.0
      %1468 = vmatprep.subr.mxu0 0.0
      %1469 = vmatpush1.msra.mxu0 0.0
      %1470 = vmatprep.subr.mxu0 0.0
      %1471 = vmatpush1.msra.mxu0 0.0
      %1472 = vmatprep.subr.mxu0 0.0
      %1473 = vmatpush1.msra.mxu0 0.0
      %1474 = vmatprep.subr.mxu0 0.0
      %1475 = vmatpush1.msra.mxu0 0.0
      %1476 = vmatprep.subr.mxu0 0.0
      %1477 = vmatpush1.msra.mxu0 0.0
      %1478 = vmatprep.subr.mxu0 0.0
      %1479 = vmatpush1.msra.mxu0 0.0
      %1480 = vmatprep.subr.mxu0 0.0
      %1481 = vmatpush1.msra.mxu0 0.0
      %1482 = vmatprep.subr.mxu0 0.0
      %1483 = vmatpush1.msra.mxu0 0.0
      %1484 = vmatprep.subr.mxu0 0.0
      %1485 = vmatpush1.msra.mxu0 0.0
      %1486 = vmatprep.subr.mxu0 0.0
      %1487 = vmatpush1.msra.mxu0 0.0
      %1488 = vmatprep.subr.mxu0 0.0
      %1489 = vmatpush1.msra.mxu0 %v1456
      %1490 = vmatprep.subr.mxu0 0.0
      %1491 = vmatpush2.msra.mxu0 0.0
      %1492 = vmatprep.subr.mxu0 0.0
      %1493 = vmatpush2.msra.mxu0 0.0
      %1494 = vmatprep.subr.mxu0 0.0
      %1495 = vmatpush2.msra.mxu0 0.0
      %1496 = vmatprep.subr.mxu0 0.0
      %1497 = vmatpush2.msra.mxu0 0.0
      %1498 = vmatprep.subr.mxu0 0.0
      %1499 = vmatpush2.msra.mxu0 0.0
      %1500 = vmatprep.subr.mxu0 0.0
      %1501 = vmatpush2.msra.mxu0 0.0
      %1502 = vmatprep.subr.mxu0 0.0
      %1503 = vmatpush2.msra.mxu0 0.0
      %1504 = vmatprep.subr.mxu0 0.0
      %1505 = vmatpush2.msra.mxu0 0.0
      %1506 = vmatprep.subr.mxu0 0.0
      %1507 = vmatpush2.msra.mxu0 0.0
      %1508 = vmatprep.subr.mxu0 0.0
      %1509 = vmatpush2.msra.mxu0 0.0
      %1510 = vmatprep.subr.mxu0 0.0
      %1511 = vmatpush2.msra.mxu0 0.0
      %1512 = vmatprep.subr.mxu0 0.0
      %1513 = vmatpush2.msra.mxu0 0.0
      %1514 = vmatprep.subr.mxu0 0.0
      %1515 = vmatpush2.msra.mxu0 0.0
      %1516 = vmatprep.subr.mxu0 0.0
      %1517 = vmatpush2.msra.mxu0 0.0
      %1518 = vmatprep.subr.mxu0 0.0
      %1519 = vmatpush2.msra.mxu0 0.0
      %1520 = vmatprep.subr.mxu0 0.0
      %1521 = vmatpush2.msra.mxu0 0.0
      %1522 = vmatprep.mubr.f32.mxu0 0.0
      %1523 = vmatmul.mubr.f32.gmra.mxu0 %v1432
      %v1524 = vpop.f32.mrf.mxu0
      %v1525 = vadd.f32 0.0, %v1524
      %v1526 = vpop.f32.mrf.mxu0
      %1527 = vmatprep.mubr.f32.mxu0 0.0
      %1528 = vmatmul.mubr.f32.gmra.mxu0 %v1435
      %v1529 = vpop.f32.mrf.mxu0
      %v1530 = vadd.f32 0.0, %v1529
      %v1531 = vpop.f32.mrf.mxu0
      %1532 = vmatprep.mubr.f32.mxu0 0.0
      %1533 = vmatmul.mubr.f32.gmra.mxu0 %v1438
      %v1534 = vpop.f32.mrf.mxu0
      %v1535 = vadd.f32 0.0, %v1534
      %v1536 = vpop.f32.mrf.mxu0
      %1537 = vmatprep.mubr.f32.mxu0 0.0
      %1538 = vmatmul.mubr.f32.gmra.mxu0 %v1441
      %v1539 = vpop.f32.mrf.mxu0
      %v1540 = vadd.f32 0.0, %v1539
      %v1541 = vpop.f32.mrf.mxu0
      %1542 = vmatprep.mubr.f32.mxu0 0.0
      %1543 = vmatmul.mubr.f32.gmra.mxu0 %v1444
      %v1544 = vpop.f32.mrf.mxu0
      %v1545 = vadd.f32 0.0, %v1544
      %v1546 = vpop.f32.mrf.mxu0
      %1547 = vmatprep.mubr.f32.mxu0 0.0
      %1548 = vmatmul.mubr.f32.gmra.mxu0 %v1447
      %v1549 = vpop.f32.mrf.mxu0
      %v1550 = vadd.f32 0.0, %v1549
      %v1551 = vpop.f32.mrf.mxu0
      %1552 = vmatprep.mubr.f32.mxu0 0.0
      %1553 = vmatmul.mubr.f32.gmra.mxu0 %v1450
      %v1554 = vpop.f32.mrf.mxu0
      %v1555 = vadd.f32 0.0, %v1554
      %v1556 = vpop.f32.mrf.mxu0
      %1557 = vmatprep.mubr.f32.mxu0 0.0
      %1558 = vmatmul.mubr.f32.gmra.mxu0 %v1453
      %v1559 = vpop.f32.mrf.mxu0
      %v1560 = vadd.f32 0.0, %v1559
      %v1561 = vpop.f32.mrf.mxu0
      %1562 = vdwg.mxu0
      %v1563 = vadd.f32 %v1404, %v1525
      %v1564 = vadd.f32 %v1405, %v1530
      %v1565 = vadd.f32 %v1406, %v1535
      %v1566 = vadd.f32 %v1407, %v1540
      %v1567 = vadd.f32 %v1408, %v1545
      %v1568 = vadd.f32 %v1409, %v1550
      %v1569 = vadd.f32 %v1410, %v1555
      %v1570 = vadd.f32 %v1411, %v1560
      %v1571 = vld [vmem:[%s1253] sm:$0xf]
      %v1572 = vld [vmem:[%s1253 + $0x4] sm:$0x1]
      %v1573 = vld [vmem:[%s1253 + $0x8] sm:$0xf]
      %v1574 = vld [vmem:[%s1253 + $0xc] sm:$0x1]
      %v1575 = vld [vmem:[%s1253 + $0x10] sm:$0xf]
      %v1576 = vld [vmem:[%s1253 + $0x14] sm:$0x1]
      %v1577 = vld [vmem:[%s1253 + $0x18] sm:$0xf]
      %v1578 = vld [vmem:[%s1253 + $0x1c] sm:$0x1]
      %v1579 = vld [vmem:[%s1253 + $0x20] sm:$0xf]
      %v1580 = vld [vmem:[%s1253 + $0x24] sm:$0x1]
      %v1581 = vld [vmem:[%s1253 + $0x28] sm:$0xf]
      %v1582 = vld [vmem:[%s1253 + $0x2c] sm:$0x1]
      %v1583 = vld [vmem:[%s1253 + $0x30] sm:$0xf]
      %v1584 = vld [vmem:[%s1253 + $0x34] sm:$0x1]
      %v1585 = vld [vmem:[%s1253 + $0x38] sm:$0xf]
      %v1586 = vld [vmem:[%s1253 + $0x3c] sm:$0x1]
      %v1587 = vunpack.c.l.bf16 %v1571
      %v1588 = vunpack.c.l.bf16 %v1572
      %v1589 = vunpack.c.l.bf16 %v1573
      %v1590 = vunpack.c.l.bf16 %v1574
      %v1591 = vunpack.c.l.bf16 %v1575
      %v1592 = vunpack.c.l.bf16 %v1576
      %v1593 = vunpack.c.l.bf16 %v1577
      %v1594 = vunpack.c.l.bf16 %v1578
      %v1595 = vunpack.c.l.bf16 %v1579
      %v1596 = vunpack.c.l.bf16 %v1580
      %v1597 = vunpack.c.l.bf16 %v1581
      %v1598 = vunpack.c.l.bf16 %v1582
      %v1599 = vunpack.c.l.bf16 %v1583
      %v1600 = vunpack.c.l.bf16 %v1584
      %v1601 = vunpack.c.l.bf16 %v1585
      %v1602 = vunpack.c.l.bf16 %v1586
      %v1619 = vrot.slane %v1587, 1
      %v1620 = vrot.slane %v1588, 1
      %v1621 = vsel %vm570, %v1619, %v1620
      %v1622 = vrot.slane %v1589, 1
      %v1623 = vrot.slane %v1590, 1
      %v1624 = vsel %vm570, %v1622, %v1623
      %v1625 = vrot.slane %v1591, 1
      %v1626 = vrot.slane %v1592, 1
      %v1627 = vsel %vm570, %v1625, %v1626
      %v1628 = vrot.slane %v1593, 1
      %v1629 = vrot.slane %v1594, 1
      %v1630 = vsel %vm570, %v1628, %v1629
      %v1631 = vrot.slane %v1595, 1
      %v1632 = vrot.slane %v1596, 1
      %v1633 = vsel %vm570, %v1631, %v1632
      %v1634 = vrot.slane %v1597, 1
      %v1635 = vrot.slane %v1598, 1
      %v1636 = vsel %vm570, %v1634, %v1635
      %v1637 = vrot.slane %v1599, 1
      %v1638 = vrot.slane %v1600, 1
      %v1639 = vsel %vm570, %v1637, %v1638
      %v1640 = vrot.slane %v1601, 1
      %v1641 = vrot.slane %v1602, 1
      %v1642 = vsel %vm570, %v1640, %v1641
      %s1643 = scalar_lea.vmem %s1, 32
      %v1644 = vld [vmem:[%s1643] sm:$0xf]
      %v1645 = vsel %vm256, %v1621, 0
      %v1647 = vsel %vm256, %v1624, 0
      %v1649 = vsel %vm256, %v1627, 0
      %v1651 = vsel %vm256, %v1630, 0
      %v1653 = vsel %vm256, %v1633, 0
      %v1655 = vsel %vm256, %v1636, 0
      %v1657 = vsel %vm256, %v1639, 0
      %v1659 = vsel %vm256, %v1642, 0
      %v1662 = vsel %vm281, %v1644, 0
      %1664 = vmatprep.subr.mxu0 0.0
      %1665 = vmatpush1.msra.mxu0 0.0
      %1666 = vmatprep.subr.mxu0 0.0
      %1667 = vmatpush1.msra.mxu0 0.0
      %1668 = vmatprep.subr.mxu0 0.0
      %1669 = vmatpush1.msra.mxu0 0.0
      %1670 = vmatprep.subr.mxu0 0.0
      %1671 = vmatpush1.msra.mxu0 0.0
      %1672 = vmatprep.subr.mxu0 0.0
      %1673 = vmatpush1.msra.mxu0 0.0
      %1674 = vmatprep.subr.mxu0 0.0
      %1675 = vmatpush1.msra.mxu0 0.0
      %1676 = vmatprep.subr.mxu0 0.0
      %1677 = vmatpush1.msra.mxu0 0.0
      %1678 = vmatprep.subr.mxu0 0.0
      %1679 = vmatpush1.msra.mxu0 0.0
      %1680 = vmatprep.subr.mxu0 0.0
      %1681 = vmatpush1.msra.mxu0 0.0
      %1682 = vmatprep.subr.mxu0 0.0
      %1683 = vmatpush1.msra.mxu0 0.0
      %1684 = vmatprep.subr.mxu0 0.0
      %1685 = vmatpush1.msra.mxu0 0.0
      %1686 = vmatprep.subr.mxu0 0.0
      %1687 = vmatpush1.msra.mxu0 0.0
      %1688 = vmatprep.subr.mxu0 0.0
      %1689 = vmatpush1.msra.mxu0 0.0
      %1690 = vmatprep.subr.mxu0 0.0
      %1691 = vmatpush1.msra.mxu0 0.0
      %1692 = vmatprep.subr.mxu0 0.0
      %1693 = vmatpush1.msra.mxu0 0.0
      %1694 = vmatprep.subr.mxu0 0.0
      %1695 = vmatpush1.msra.mxu0 %v1662
      %1696 = vmatprep.subr.mxu0 0.0
      %1697 = vmatpush2.msra.mxu0 0.0
      %1698 = vmatprep.subr.mxu0 0.0
      %1699 = vmatpush2.msra.mxu0 0.0
      %1700 = vmatprep.subr.mxu0 0.0
      %1701 = vmatpush2.msra.mxu0 0.0
      %1702 = vmatprep.subr.mxu0 0.0
      %1703 = vmatpush2.msra.mxu0 0.0
      %1704 = vmatprep.subr.mxu0 0.0
      %1705 = vmatpush2.msra.mxu0 0.0
      %1706 = vmatprep.subr.mxu0 0.0
      %1707 = vmatpush2.msra.mxu0 0.0
      %1708 = vmatprep.subr.mxu0 0.0
      %1709 = vmatpush2.msra.mxu0 0.0
      %1710 = vmatprep.subr.mxu0 0.0
      %1711 = vmatpush2.msra.mxu0 0.0
      %1712 = vmatprep.subr.mxu0 0.0
      %1713 = vmatpush2.msra.mxu0 0.0
      %1714 = vmatprep.subr.mxu0 0.0
      %1715 = vmatpush2.msra.mxu0 0.0
      %1716 = vmatprep.subr.mxu0 0.0
      %1717 = vmatpush2.msra.mxu0 0.0
      %1718 = vmatprep.subr.mxu0 0.0
      %1719 = vmatpush2.msra.mxu0 0.0
      %1720 = vmatprep.subr.mxu0 0.0
      %1721 = vmatpush2.msra.mxu0 0.0
      %1722 = vmatprep.subr.mxu0 0.0
      %1723 = vmatpush2.msra.mxu0 0.0
      %1724 = vmatprep.subr.mxu0 0.0
      %1725 = vmatpush2.msra.mxu0 0.0
      %1726 = vmatprep.subr.mxu0 0.0
      %1727 = vmatpush2.msra.mxu0 0.0
      %1728 = vmatprep.mubr.f32.mxu0 0.0
      %1729 = vmatmul.mubr.f32.gmra.mxu0 %v1645
      %v1730 = vpop.f32.mrf.mxu0
      %v1731 = vadd.f32 0.0, %v1730
      %v1732 = vpop.f32.mrf.mxu0
      %1733 = vmatprep.mubr.f32.mxu0 0.0
      %1734 = vmatmul.mubr.f32.gmra.mxu0 %v1647
      %v1735 = vpop.f32.mrf.mxu0
      %v1736 = vadd.f32 0.0, %v1735
      %v1737 = vpop.f32.mrf.mxu0
      %1738 = vmatprep.mubr.f32.mxu0 0.0
      %1739 = vmatmul.mubr.f32.gmra.mxu0 %v1649
      %v1740 = vpop.f32.mrf.mxu0
      %v1741 = vadd.f32 0.0, %v1740
      %v1742 = vpop.f32.mrf.mxu0
      %1743 = vmatprep.mubr.f32.mxu0 0.0
      %1744 = vmatmul.mubr.f32.gmra.mxu0 %v1651
      %v1745 = vpop.f32.mrf.mxu0
      %v1746 = vadd.f32 0.0, %v1745
      %v1747 = vpop.f32.mrf.mxu0
      %1748 = vmatprep.mubr.f32.mxu0 0.0
      %1749 = vmatmul.mubr.f32.gmra.mxu0 %v1653
      %v1750 = vpop.f32.mrf.mxu0
      %v1751 = vadd.f32 0.0, %v1750
      %v1752 = vpop.f32.mrf.mxu0
      %1753 = vmatprep.mubr.f32.mxu0 0.0
      %1754 = vmatmul.mubr.f32.gmra.mxu0 %v1655
      %v1755 = vpop.f32.mrf.mxu0
      %v1756 = vadd.f32 0.0, %v1755
      %v1757 = vpop.f32.mrf.mxu0
      %1758 = vmatprep.mubr.f32.mxu0 0.0
      %1759 = vmatmul.mubr.f32.gmra.mxu0 %v1657
      %v1760 = vpop.f32.mrf.mxu0
      %v1761 = vadd.f32 0.0, %v1760
      %v1762 = vpop.f32.mrf.mxu0
      %1763 = vmatprep.mubr.f32.mxu0 0.0
      %1764 = vmatmul.mubr.f32.gmra.mxu0 %v1659
      %v1765 = vpop.f32.mrf.mxu0
      %v1766 = vadd.f32 0.0, %v1765
      %v1767 = vpop.f32.mrf.mxu0
      %1768 = vdwg.mxu0
      %v1769 = vadd.f32 %v1563, %v1731
      %v1770 = vadd.f32 %v1564, %v1736
      %v1771 = vadd.f32 %v1565, %v1741
      %v1772 = vadd.f32 %v1566, %v1746
      %v1773 = vadd.f32 %v1567, %v1751
      %v1774 = vadd.f32 %v1568, %v1756
      %v1775 = vadd.f32 %v1569, %v1761
      %v1776 = vadd.f32 %v1570, %v1766
      %vm1777 = vcmask 523264
      %v1779 = vsel %vm1777, 1.0, 0
      %1781 = vmatprep.subr.mxu0 0.0
      %1782 = vmatpush1.msra.mxu0 0.0
      %1783 = vmatprep.subr.mxu0 0.0
      %1784 = vmatpush1.msra.mxu0 0.0
      %1785 = vmatprep.subr.mxu0 0.0
      %1786 = vmatpush1.msra.mxu0 0.0
      %1787 = vmatprep.subr.mxu0 0.0
      %1788 = vmatpush1.msra.mxu0 0.0
      %1789 = vmatprep.subr.mxu0 0.0
      %1790 = vmatpush1.msra.mxu0 0.0
      %1791 = vmatprep.subr.mxu0 0.0
      %1792 = vmatpush1.msra.mxu0 0.0
      %1793 = vmatprep.subr.mxu0 0.0
      %1794 = vmatpush1.msra.mxu0 0.0
      %1795 = vmatprep.subr.mxu0 0.0
      %1796 = vmatpush1.msra.mxu0 0.0
      %1797 = vmatprep.subr.mxu0 0.0
      %1798 = vmatpush1.msra.mxu0 %v1776
      %1799 = vmatprep.subr.mxu0 0.0
      %1800 = vmatpush1.msra.mxu0 %v1775
      %1801 = vmatprep.subr.mxu0 0.0
      %1802 = vmatpush1.msra.mxu0 %v1774
      %1803 = vmatprep.subr.mxu0 0.0
      %1804 = vmatpush1.msra.mxu0 %v1773
      %1805 = vmatprep.subr.mxu0 0.0
      %1806 = vmatpush1.msra.mxu0 %v1772
      %1807 = vmatprep.subr.mxu0 0.0
      %1808 = vmatpush1.msra.mxu0 %v1771
      %1809 = vmatprep.subr.mxu0 0.0
      %1810 = vmatpush1.msra.mxu0 %v1770
      %1811 = vmatprep.subr.mxu0 0.0
      %1812 = vmatpush1.msra.mxu0 %v1769
      %1813 = vmatprep.subr.mxu0 0.0
      %1814 = vmatpush2.msra.mxu0 0.0
      %1815 = vmatprep.subr.mxu0 0.0
      %1816 = vmatpush2.msra.mxu0 0.0
      %1817 = vmatprep.subr.mxu0 0.0
      %1818 = vmatpush2.msra.mxu0 0.0
      %1819 = vmatprep.subr.mxu0 0.0
      %1820 = vmatpush2.msra.mxu0 0.0
      %1821 = vmatprep.subr.mxu0 0.0
      %1822 = vmatpush2.msra.mxu0 0.0
      %1823 = vmatprep.subr.mxu0 0.0
      %1824 = vmatpush2.msra.mxu0 0.0
      %1825 = vmatprep.subr.mxu0 0.0
      %1826 = vmatpush2.msra.mxu0 0.0
      %1827 = vmatprep.subr.mxu0 0.0
      %1828 = vmatpush2.msra.mxu0 0.0
      %1829 = vmatprep.subr.mxu0 0.0
      %1830 = vmatpush2.msra.mxu0 0.0
      %1831 = vmatprep.subr.mxu0 0.0
      %1832 = vmatpush2.msra.mxu0 0.0
      %1833 = vmatprep.subr.mxu0 0.0
      %1834 = vmatpush2.msra.mxu0 0.0
      %1835 = vmatprep.subr.mxu0 0.0
      %1836 = vmatpush2.msra.mxu0 0.0
      %1837 = vmatprep.subr.mxu0 0.0
      %1838 = vmatpush2.msra.mxu0 0.0
      %1839 = vmatprep.subr.mxu0 0.0
      %1840 = vmatpush2.msra.mxu0 0.0
      %1841 = vmatprep.subr.mxu0 0.0
      %1842 = vmatpush2.msra.mxu0 0.0
      %1843 = vmatprep.subr.mxu0 0.0
      %1844 = vmatpush2.msra.mxu0 0.0
      %1845 = vmatprep.mubr.f32.mxu0 0.0
      %1846 = vmatmul.mubr.f32.gmra.mxu0 %v1779
      %v1847 = vpop.f32.mrf.mxu0
      %v1848 = vadd.f32 0.0, %v1847
      %v1849 = vpop.f32.mrf.mxu0
      %1850 = vdwg.mxu0
      %v1851 = vmul.f32 %v1848, 0.015625
      %v1852 = vlaneseq
      %v1853 = vshrl.u32 %v1852, 7
      %v1854 = vsub.s32 0, %v1853
      %v1855 = vrot.slane %v1851, %v1854
      %v1856 = vsub.f32 %v1769, %v1855
      %v1857 = vsub.f32 %v1770, %v1855
      %v1858 = vsub.f32 %v1771, %v1855
      %v1859 = vsub.f32 %v1772, %v1855
      %v1860 = vsub.f32 %v1773, %v1855
      %v1861 = vsub.f32 %v1774, %v1855
      %v1862 = vsub.f32 %v1775, %v1855
      %v1863 = vsub.f32 %v1776, %v1855
      %v1864 = vmul.f32 %v1856, %v1856
      %v1865 = vmul.f32 %v1857, %v1857
      %v1866 = vmul.f32 %v1858, %v1858
      %v1867 = vmul.f32 %v1859, %v1859
      %v1868 = vmul.f32 %v1860, %v1860
      %v1869 = vmul.f32 %v1861, %v1861
      %v1870 = vmul.f32 %v1862, %v1862
      %v1871 = vmul.f32 %v1863, %v1863
      %1872 = vmatprep.subr.mxu0 0.0
      %1873 = vmatpush1.msra.mxu0 0.0
      %1874 = vmatprep.subr.mxu0 0.0
      %1875 = vmatpush1.msra.mxu0 0.0
      %1876 = vmatprep.subr.mxu0 0.0
      %1877 = vmatpush1.msra.mxu0 0.0
      %1878 = vmatprep.subr.mxu0 0.0
      %1879 = vmatpush1.msra.mxu0 0.0
      %1880 = vmatprep.subr.mxu0 0.0
      %1881 = vmatpush1.msra.mxu0 0.0
      %1882 = vmatprep.subr.mxu0 0.0
      %1883 = vmatpush1.msra.mxu0 0.0
      %1884 = vmatprep.subr.mxu0 0.0
      %1885 = vmatpush1.msra.mxu0 0.0
      %1886 = vmatprep.subr.mxu0 0.0
      %1887 = vmatpush1.msra.mxu0 0.0
      %1888 = vmatprep.subr.mxu0 0.0
      %1889 = vmatpush1.msra.mxu0 %v1871
      %1890 = vmatprep.subr.mxu0 0.0
      %1891 = vmatpush1.msra.mxu0 %v1870
      %1892 = vmatprep.subr.mxu0 0.0
      %1893 = vmatpush1.msra.mxu0 %v1869
      %1894 = vmatprep.subr.mxu0 0.0
      %1895 = vmatpush1.msra.mxu0 %v1868
      %1896 = vmatprep.subr.mxu0 0.0
      %1897 = vmatpush1.msra.mxu0 %v1867
      %1898 = vmatprep.subr.mxu0 0.0
      %1899 = vmatpush1.msra.mxu0 %v1866
      %1900 = vmatprep.subr.mxu0 0.0
      %1901 = vmatpush1.msra.mxu0 %v1865
      %1902 = vmatprep.subr.mxu0 0.0
      %1903 = vmatpush1.msra.mxu0 %v1864
      %1904 = vmatprep.subr.mxu0 0.0
      %1905 = vmatpush2.msra.mxu0 0.0
      %1906 = vmatprep.subr.mxu0 0.0
      %1907 = vmatpush2.msra.mxu0 0.0
      %1908 = vmatprep.subr.mxu0 0.0
      %1909 = vmatpush2.msra.mxu0 0.0
      %1910 = vmatprep.subr.mxu0 0.0
      %1911 = vmatpush2.msra.mxu0 0.0
      %1912 = vmatprep.subr.mxu0 0.0
      %1913 = vmatpush2.msra.mxu0 0.0
      %1914 = vmatprep.subr.mxu0 0.0
      %1915 = vmatpush2.msra.mxu0 0.0
      %1916 = vmatprep.subr.mxu0 0.0
      %1917 = vmatpush2.msra.mxu0 0.0
      %1918 = vmatprep.subr.mxu0 0.0
      %1919 = vmatpush2.msra.mxu0 0.0
      %1920 = vmatprep.subr.mxu0 0.0
      %1921 = vmatpush2.msra.mxu0 0.0
      %1922 = vmatprep.subr.mxu0 0.0
      %1923 = vmatpush2.msra.mxu0 0.0
      %1924 = vmatprep.subr.mxu0 0.0
      %1925 = vmatpush2.msra.mxu0 0.0
      %1926 = vmatprep.subr.mxu0 0.0
      %1927 = vmatpush2.msra.mxu0 0.0
      %1928 = vmatprep.subr.mxu0 0.0
      %1929 = vmatpush2.msra.mxu0 0.0
      %1930 = vmatprep.subr.mxu0 0.0
      %1931 = vmatpush2.msra.mxu0 0.0
      %1932 = vmatprep.subr.mxu0 0.0
      %1933 = vmatpush2.msra.mxu0 0.0
      %1934 = vmatprep.subr.mxu0 0.0
      %1935 = vmatpush2.msra.mxu0 0.0
      %1936 = vmatprep.mubr.f32.mxu0 0.0
      %1937 = vmatmul.mubr.f32.gmra.mxu0 %v1779
      %v1938 = vpop.f32.mrf.mxu0
      %v1939 = vadd.f32 0.0, %v1938
      %v1940 = vpop.f32.mrf.mxu0
      %1941 = vdwg.mxu0
      %1942 = vst [vmem:[%s216] sm:$0x1] %v1848
      %1943 = vst [vmem:[%s219] sm:$0x1] %v1939
      %1944 = vxpose.xlu0.b32.start [1/16] %v1769, 128
      %1945 = vxpose.xlu0.b32.cont [2/16] %v1770, 128
      %1946 = vxpose.xlu0.b32.cont [3/16] %v1771, 128
      %1947 = vxpose.xlu0.b32.cont [4/16] %v1772, 128
      %1948 = vxpose.xlu0.b32.cont [5/16] %v1773, 128
      %1949 = vxpose.xlu0.b32.cont [6/16] %v1774, 128
      %1950 = vxpose.xlu0.b32.cont [7/16] %v1775, 128
      %1951 = vxpose.xlu0.b32.cont [8/16] %v1776, 128
      %1952 = vxpose.xlu0.b32.cont [9/16] 0.0, 128
      %1953 = vxpose.xlu0.b32.cont [10/16] 0.0, 128
      %1954 = vxpose.xlu0.b32.cont [11/16] 0.0, 128
      %1955 = vxpose.xlu0.b32.cont [12/16] 0.0, 128
      %1956 = vxpose.xlu0.b32.cont [13/16] 0.0, 128
      %1957 = vxpose.xlu0.b32.cont [14/16] 0.0, 128
      %1958 = vxpose.xlu0.b32.cont [15/16] 0.0, 128
      %1959 = vxpose.xlu0.b32.end [16/16] 0.0, 128
      %v1960 = vpop.trf.xlu0
      %v1961 = vpop.trf.xlu0
      %v1962 = vpop.trf.xlu0
      %v1963 = vpop.trf.xlu0
      %v1964 = vpop.trf.xlu0
      %v1965 = vpop.trf.xlu0
      %v1966 = vpop.trf.xlu0
      %v1967 = vpop.trf.xlu0
      %v1968 = vpop.trf.xlu0
      %v1969 = vpop.trf.xlu0
      %v1970 = vpop.trf.xlu0
      %v1971 = vpop.trf.xlu0
      %v1972 = vpop.trf.xlu0
      %v1973 = vpop.trf.xlu0
      %v1974 = vpop.trf.xlu0
      %v1975 = vpop.trf.xlu0
      %v1976 = vpack.c.bf16 %v1961, %v1960
      %v1977 = vpack.c.bf16 %v1963, %v1962
      %v1978 = vpack.c.bf16 %v1965, %v1964
      %v1979 = vpack.c.bf16 %v1967, %v1966
      %v1980 = vpack.c.bf16 %v1969, %v1968
      %v1981 = vpack.c.bf16 %v1971, %v1970
      %v1982 = vpack.c.bf16 %v1973, %v1972
      %v1983 = vpack.c.bf16 %v1975, %v1974
      %v1992 = vunpack.c.l.b16 %v1976
      %v1993 = vunpack.c.h.b16 %v1976
      %v1994 = vunpack.c.l.b16 %v1977
      %v1995 = vunpack.c.h.b16 %v1977
      %v1996 = vunpack.c.l.b16 %v1978
      %v1997 = vunpack.c.h.b16 %v1978
      %v1998 = vunpack.c.l.b16 %v1979
      %v1999 = vunpack.c.h.b16 %v1979
      %v2000 = vunpack.c.l.b16 %v1980
      %v2001 = vunpack.c.h.b16 %v1980
      %v2002 = vunpack.c.l.b16 %v1981
      %v2003 = vunpack.c.h.b16 %v1981
      %v2004 = vunpack.c.l.b16 %v1982
      %v2005 = vunpack.c.h.b16 %v1982
      %v2006 = vunpack.c.l.b16 %v1983
      %v2007 = vunpack.c.h.b16 %v1983
      %v2008 = vpack.c.b16 %v1992, %v1992
      %v2009 = vpack.c.b16 %v1993, %v1993
      %v2010 = vpack.c.b16 %v1994, %v1994
      %v2011 = vpack.c.b16 %v1995, %v1995
      %v2012 = vpack.c.b16 %v1996, %v1996
      %v2013 = vpack.c.b16 %v1997, %v1997
      %v2014 = vpack.c.b16 %v1998, %v1998
      %v2015 = vpack.c.b16 %v1999, %v1999
      %v2016 = vpack.c.b16 %v2000, %v2000
      %v2017 = vpack.c.b16 %v2001, %v2001
      %v2018 = vpack.c.b16 %v2002, %v2002
      %v2019 = vpack.c.b16 %v2003, %v2003
      %v2020 = vpack.c.b16 %v2004, %v2004
      %v2021 = vpack.c.b16 %v2005, %v2005
      %v2022 = vpack.c.b16 %v2006, %v2006
      %v2023 = vpack.c.b16 %v2007, %v2007
      %vm2040 = vcmask 519168
      %2041 = vst.msk [vmem:[%s213] sm:$0xf] %vm2040, %v2008
      %2042 = vst.msk [vmem:[%s213 + $0x4] sm:$0xf] %vm2040, %v2009
      %2043 = vst.msk [vmem:[%s213 + $0x8] sm:$0xf] %vm2040, %v2010
      %2044 = vst.msk [vmem:[%s213 + $0xc] sm:$0xf] %vm2040, %v2011
      %2045 = vst.msk [vmem:[%s213 + $0x10] sm:$0xf] %vm2040, %v2012
      %2046 = vst.msk [vmem:[%s213 + $0x14] sm:$0xf] %vm2040, %v2013
      %2047 = vst.msk [vmem:[%s213 + $0x18] sm:$0xf] %vm2040, %v2014
      %2048 = vst.msk [vmem:[%s213 + $0x1c] sm:$0xf] %vm2040, %v2015
      %2049 = vst.msk [vmem:[%s213 + $0x20] sm:$0xf] %vm2040, %v2016
      %2050 = vst.msk [vmem:[%s213 + $0x24] sm:$0xf] %vm2040, %v2017
      %2051 = vst.msk [vmem:[%s213 + $0x28] sm:$0xf] %vm2040, %v2018
      %2052 = vst.msk [vmem:[%s213 + $0x2c] sm:$0xf] %vm2040, %v2019
      %2053 = vst.msk [vmem:[%s213 + $0x30] sm:$0xf] %vm2040, %v2020
      %2054 = vst.msk [vmem:[%s213 + $0x34] sm:$0xf] %vm2040, %v2021
      %2055 = vst.msk [vmem:[%s213 + $0x38] sm:$0xf] %vm2040, %v2022
      %2056 = vst.msk [vmem:[%s213 + $0x3c] sm:$0xf] %vm2040, %v2023
      %p2057 = scmp.lt.s32.totalorder %s16, 1
      %s2058 = scalar_select %p2057, %s16, 1
      %s2059 = smul.addr %s2058, 16
      %s2060 = smul.addr %s2059, 4
      %s2061 = scalar_lea.vmem %s2, %s2060
      %p2062 = scmp.lt.s32.totalorder %s16, 1
      %s2063 = scalar_select %p2062, %s16, 1
      %s2064 = scalar_lea.vmem %s3, %s2063
      %p2065 = scmp.lt.s32.totalorder %s16, 1
      %s2066 = scalar_select %p2065, %s16, 1
      %s2067 = scalar_lea.vmem %s4, %s2066
      // Predicated region
      $region29: #{downsample_block.2} parent=27 // pred_check
        %p2068 = pneg %p81
      $region30: #{downsample_block.2} parent=27 // pred_check_branch
        %2070 = sbr.rel (%p2068) target = $region32
      $region31: #{downsample_block.2} parent=27 // pred_region
        _
      $region32: #{downsample_block.2} parent=27 // pred_fallthru
        _
      // Predicated region
      $region33: #{downsample_block.2} parent=27 // pred_check
        %p2071 = pneg %p107
      $region34: #{downsample_block.2} parent=27 // pred_check_branch
        %2073 = sbr.rel (%p2071) target = $region36
      $region35: #{downsample_block.2} parent=27 // pred_region
        _
      $region36: #{downsample_block.2} parent=27 // pred_fallthru
        _
      // Predicated region
      $region37: #{downsample_block.2} parent=27 // pred_check
        %p2074 = pneg %p133
      $region38: #{downsample_block.2} parent=27 // pred_check_branch
        %2076 = sbr.rel (%p2074) target = $region40
      $region39: #{downsample_block.2} parent=27 // pred_region
        _
      $region40: #{downsample_block.2} parent=27 // pred_fallthru
        _
    $region28: #{downsample_block.2} parent=5 // pred_fallthru
      _
    %p2077 = scmp.le.s32.totalorder 2, %s11
    // Predicated region
    $region41: #{downsample_block.2} parent=5 // pred_check
      %p2078 = pneg %p2077
    $region42: #{downsample_block.2} parent=5 // pred_check_branch
      %2080 = sbr.rel (%p2078) target = $region44
    $region43: #{downsample_block.2} parent=5 // pred_region
      %s2081 = ssub.s32 %s11, 2
      // Predicated region
      $region45: #{downsample_block.2} parent=43 // pred_check
        %p2082 = pneg %p87
      $region46: #{downsample_block.2} parent=43 // pred_check_branch
        %2084 = sbr.rel (%p2082) target = $region48
      $region47: #{downsample_block.2} parent=43 // pred_region
        %p2085 = scmp.lt.s32.totalorder %s17, 1
        %s2086 = scalar_select %p2085, %s17, 1
        %s2087 = smul.addr %s2086, 16
        %s2088 = smul.addr %s2087, 4
        %s2089 = scalar_lea.vmem %s2, %s2088
      $region48: #{downsample_block.2} parent=43 // pred_fallthru
        _
      // Predicated region
      $region49: #{downsample_block.2} parent=43 // pred_check
        %p2090 = pneg %p113
      $region50: #{downsample_block.2} parent=43 // pred_check_branch
        %2092 = sbr.rel (%p2090) target = $region52
      $region51: #{downsample_block.2} parent=43 // pred_region
        %p2093 = scmp.lt.s32.totalorder %s17, 1
        %s2094 = scalar_select %p2093, %s17, 1
        %s2095 = scalar_lea.vmem %s3, %s2094
      $region52: #{downsample_block.2} parent=43 // pred_fallthru
        _
      // Predicated region
      $region53: #{downsample_block.2} parent=43 // pred_check
        %p2096 = pneg %p139
      $region54: #{downsample_block.2} parent=43 // pred_check_branch
        %2098 = sbr.rel (%p2096) target = $region56
      $region55: #{downsample_block.2} parent=43 // pred_region
        %p2099 = scmp.lt.s32.totalorder %s17, 1
        %s2100 = scalar_select %p2099, %s17, 1
        %s2101 = scalar_lea.vmem %s4, %s2100
      $region56: #{downsample_block.2} parent=43 // pred_fallthru
        _
    $region44: #{downsample_block.2} parent=5 // pred_fallthru
      _
  $region6: #{downsample_block.2} parent=0 // loop_footer
    %s15 = sadd.s32 1, %s11
  $region7: #{downsample_block.2} parent=0 // loop_footer_branch
    %10 = sbr.rel target = $region3
  $region8: #{downsample_block.2} parent=0 // loop_exit
    _

</llo_original>
